<compile_context>
chip_gen: v6e
topology: v6e:2x2x1
jax: 0.10.0
libtpu: 0.0.40
codegen_flags: <defaults>
</compile_context>

<pallas_src>
import functools

import jax
import jax.numpy as jnp
from jax import lax
from jax.experimental import pallas as pl
from jax.experimental.pallas import tpu as pltpu


# ---------------------------------------------------------------------------
# Shared fused compute: ReLU -> Conv2d(3x3, s2, p1) -> ReLU ->
# ConvTranspose2d(3x3, s2, p1, op1), two MXU calls total.
# ---------------------------------------------------------------------------
def _compute_up(xv, wd_ref, wu_ref, *, Ho, Wo, Cin, inner, outer):
    # xv     : (Ho, 2, Wo, 2*Cin) f32, xv[i, r, j, s*Cin + c] = x[2i+r, 2j+s, c]
    # wd_ref : (9*Cin, inner)  bf16, rows ordered (kh, kw, cin)
    # wu_ref : (4*inner, 4*outer) bf16 block matrix (see wrapper)
    # returns up_all: (Ho*Wo, 4*outer) f32 with lanes ordered (r, s, c_out),
    #         up_all[i*Wo + j, (2r+s)*outer + c] = up[2i+r, 2j+s, c].

    # ReLU once per parity-phase slab (slabs are disjoint -> one pass over x).
    ph = [[jnp.maximum(xv[:, r, :, s * Cin:(s + 1) * Cin], 0.0) for s in range(2)]
          for r in range(2)]                                  # each (Ho, Wo, Cin)

    zero_c = jnp.zeros((Ho, 1, Cin), jnp.float32)
    zero_r = jnp.zeros((1, Wo, Cin), jnp.float32)

    def tap(kh, kw):
        # window[i, j] = relu(x[2i + kh - 1, 2j + kw - 1]); zeros off-image.
        p = ph[0 if kh == 1 else 1][0 if kw == 1 else 1]
        if kw == 0:                              # left border -> zero column
            p = jnp.concatenate([zero_c, p[:, :Wo - 1, :]], axis=1)
        if kh == 0:                              # top border -> zero row
            p = jnp.concatenate([zero_r, p[:Ho - 1, :, :]], axis=0)
        return p.reshape(Ho * Wo, Cin)

    # ---- down conv: ONE matmul, K = 9*Cin
    a_cat = jnp.concatenate([tap(kh, kw) for kh in range(3) for kw in range(3)],
                            axis=-1).astype(jnp.bfloat16)     # (Ho*Wo, 9*Cin)
    acc = jnp.dot(a_cat, wd_ref[...], preferred_element_type=jnp.float32)

    # ---- up path: ReLU then subpixel transposed conv as ONE block matmul
    z = jnp.maximum(acc, 0.0).reshape(Ho, Wo, inner)
    zc = jnp.zeros((Ho, 1, inner), jnp.float32)
    zr = jnp.zeros((1, Wo, inner), jnp.float32)
    z01 = jnp.concatenate([z[:, 1:, :], zc], axis=1)          # z[i, j+1]
    z10 = jnp.concatenate([z[1:, :, :], zr], axis=0)          # z[i+1, j]
    z11 = jnp.concatenate([z01[1:, :, :], zr], axis=0)        # z[i+1, j+1]
    z_cat = jnp.concatenate(
        [p.reshape(Ho * Wo, inner) for p in (z, z01, z10, z11)],
        axis=-1).astype(jnp.bfloat16)                         # (Ho*Wo, 4*inner)
    return jnp.dot(z_cat, wu_ref[...], preferred_element_type=jnp.float32)


# ---------------------------------------------------------------------------
# Kernel A: per-(image, phase) BatchNorm partial statistics only.
# ---------------------------------------------------------------------------
def _stats_kernel(xr_ref, wd_ref, wu_ref, stats_ref, *, Ho, Wo, Cin, inner, outer):
    # stats_ref: (1, 2, 4*outer) f32 — group sums and group-centered
    # sum-of-squares (groups of Ho*Wo elements: one per image x output phase).
    up = _compute_up(xr_ref[0], wd_ref, wu_ref,
                     Ho=Ho, Wo=Wo, Cin=Cin, inner=inner, outer=outer)
    s = jnp.sum(up, axis=0, keepdims=True)                    # (1, 4*outer)
    d = up - s * (1.0 / (Ho * Wo))
    ss = jnp.sum(d * d, axis=0, keepdims=True)
    stats_ref[0, 0:1, :] = s
    stats_ref[0, 1:2, :] = ss


# ---------------------------------------------------------------------------
# Kernel B: recompute `up`, apply BN affine, concat the skip, and store
# directly in a layout that reshapes for free to pixel-shuffled NHWC.
# ---------------------------------------------------------------------------
def _bn_concat_kernel(xr_ref, wd_ref, wu_ref, scale_ref, shift_ref, out_ref,
                      *, Ho, Wo, Cin, inner, outer):
    # out_ref: (1, Ho, 2, Wo, 2*(Cin+outer)); out[0, i, r, j, s*Ct + c'] is the
    # final NHWC value at pixel (2i+r, 2j+s), channel c'.
    xv = xr_ref[0]                                            # (Ho, 2, Wo, 2*Cin)
    up = _compute_up(xv, wd_ref, wu_ref,
                     Ho=Ho, Wo=Wo, Cin=Cin, inner=inner, outer=outer)
    bn = up * scale_ref[...] + shift_ref[...]                 # (Ho*Wo, 4*outer)
    for r in range(2):
        bn_r = bn[:, r * 2 * outer:(r + 1) * 2 * outer].reshape(Ho, Wo, 2 * outer)
        xb_r = xv[:, r, :, :]                                 # (Ho, Wo, 2*Cin)
        out_ref[0, :, r, :, :] = jnp.concatenate(
            [xb_r[..., :Cin], bn_r[..., :outer],
             xb_r[..., Cin:], bn_r[..., outer:]], axis=-1)


def _vmem_limit(*, H, W, Cin, inner, outer, with_out):
    # Scoped-VMEM budget derived from the actual per-step block sizes plus
    # in-kernel temporaries; capped at 40 MiB (v7x headroom under 64 MiB).
    # TODO(synk): very large images need a spatial row-tile grid axis instead.
    Ho, Wo = H // 2, W // 2
    Ct = Cin + outer
    blocks = H * W * Cin * 4 + (9 * Cin * inner + 16 * inner * outer) * 2
    blocks += 2 * 4 * outer * 4
    if with_out:
        blocks += H * W * Ct * 4
    interm = (3 * H * W * Cin * 4                 # relu'd phase slabs + taps
              + Ho * Wo * (9 * Cin + 8 * inner) * 4
              + 3 * Ho * Wo * 4 * outer * 4
              + 2 * H * W * Ct * 4)
    need = 2 * blocks + 2 * interm
    return int(min(max(need, 8 << 20), 40 << 20))


# ---------------------------------------------------------------------------
# Wrapper: innermost SegV5Block forward (NCHW interface, like PyTorch).
# ---------------------------------------------------------------------------
def seg_v5_block_innermost(x_nchw, w_down, w_up, gamma, beta, eps=1e-5):
    """x:(N,Cin,H,W); w_down:(inner,Cin,3,3); w_up:(inner,outer,3,3) (torch
    ConvTranspose2d layout); gamma,beta:(outer,). Returns (N, Cin+outer, H, W)."""
    N, Cin, H, W = x_nchw.shape
    inner = w_down.shape[0]
    outer = w_up.shape[1]
    assert H % 2 == 0 and W % 2 == 0
    Ho, Wo = H // 2, W // 2
    Ct = Cin + outer

    # NHWC compute layout; the parity-phase view below is a FREE reshape
    # (no pad / transpose / extra HBM copy of x before the kernels).
    x = jnp.transpose(x_nchw, (0, 2, 3, 1)).astype(jnp.float32)
    xr = x.reshape(N, Ho, 2, Wo, 2 * Cin)

    # Host-prepacked bf16 MXU weights.
    # Down conv: rows (kh, kw, cin) -> one K = 9*Cin matmul in-kernel.
    wd_cat = jnp.transpose(w_down, (2, 3, 1, 0)).reshape(9 * Cin, inner)
    wd_cat = wd_cat.astype(jnp.bfloat16)
    # Transposed conv: block matrix over rows [z00; z01; z10; z11] and output
    # phase columns [(r,s) = 00 | 01 | 10 | 11]; zero blocks for absent taps.
    wt = jnp.transpose(w_up, (2, 3, 0, 1)).astype(jnp.float32)   # (3,3,inner,outer)
    zz = jnp.zeros((inner, outer), jnp.float32)
    wu_full = jnp.concatenate([
        jnp.concatenate([wt[1, 1], wt[1, 2], wt[2, 1], wt[2, 2]], axis=1),
        jnp.concatenate([zz,       wt[1, 0], zz,       wt[2, 0]], axis=1),
        jnp.concatenate([zz,       zz,       wt[0, 1], wt[0, 2]], axis=1),
        jnp.concatenate([zz,       zz,       zz,       wt[0, 0]], axis=1),
    ], axis=0).astype(jnp.bfloat16)                              # (4*inner, 4*outer)

    xspec = pl.BlockSpec((1, Ho, 2, Wo, 2 * Cin), lambda n: (n, 0, 0, 0, 0))
    wspec = [pl.BlockSpec((9 * Cin, inner), lambda n: (0, 0)),
             pl.BlockSpec((4 * inner, 4 * outer), lambda n: (0, 0))]

    # ---- pass 1: per-(image, phase) BatchNorm partials
    stats = pl.pallas_call(
        functools.partial(_stats_kernel, Ho=Ho, Wo=Wo, Cin=Cin,
                          inner=inner, outer=outer),
        out_shape=jax.ShapeDtypeStruct((N, 2, 4 * outer), jnp.float32),
        grid=(N,),
        in_specs=[xspec] + wspec,
        out_specs=pl.BlockSpec((1, 2, 4 * outer), lambda n: (n, 0, 0)),
        compiler_params=pltpu.CompilerParams(
            dimension_semantics=("parallel",),
            vmem_limit_bytes=_vmem_limit(H=H, W=W, Cin=Cin, inner=inner,
                                         outer=outer, with_out=False)),
    )(xr, wd_cat, wu_full)

    # ---- O(C) glue: parallel-variance combine of the group partials.
    # TODO(synk): BatchNorm running_mean/var buffers are not updated
    # (forward-only, training-mode normalization).
    stats4 = stats.reshape(N, 2, 4, outer)
    s_g = stats4[:, 0]                                           # (N, 4, outer)
    ss_g = stats4[:, 1]
    m = float(Ho * Wo)
    count = float(N * H * W)
    mean = jnp.sum(s_g, axis=(0, 1)) / count
    var = (jnp.sum(ss_g, axis=(0, 1))
           + m * jnp.sum((s_g / m - mean) ** 2, axis=(0, 1))) / count
    scale = gamma.astype(jnp.float32) * lax.rsqrt(var + eps)
    shift = beta.astype(jnp.float32) - mean * scale
    scale4 = jnp.tile(scale, 4).reshape(1, 4 * outer)
    shift4 = jnp.tile(shift, 4).reshape(1, 4 * outer)

    # ---- pass 2: recompute + BN affine + skip concat + free pixel shuffle
    out5 = pl.pallas_call(
        functools.partial(_bn_concat_kernel, Ho=Ho, Wo=Wo, Cin=Cin,
                          inner=inner, outer=outer),
        out_shape=jax.ShapeDtypeStruct((N, Ho, 2, Wo, 2 * Ct), jnp.float32),
        grid=(N,),
        in_specs=[xspec] + wspec + [
            pl.BlockSpec((1, 4 * outer), lambda n: (0, 0)),
            pl.BlockSpec((1, 4 * outer), lambda n: (0, 0))],
        out_specs=pl.BlockSpec((1, Ho, 2, Wo, 2 * Ct), lambda n: (n, 0, 0, 0, 0)),
        compiler_params=pltpu.CompilerParams(
            dimension_semantics=("parallel",),
            vmem_limit_bytes=_vmem_limit(H=H, W=W, Cin=Cin, inner=inner,
                                         outer=outer, with_out=True)),
    )(xr, wd_cat, wu_full, scale4, shift4)

    # (N, Ho, 2, Wo, 2*Ct) is bit-identical to pixel-shuffled NHWC -> free reshape.
    out_nhwc = out5.reshape(N, H, W, Ct)
    return jnp.transpose(out_nhwc, (0, 3, 1, 2))                 # NCHW interface


# ------------------------------ reference ---------------------------------
def ref_forward(x, w_down, w_up, gamma, beta, eps=1e-5):
    a = jnp.maximum(x, 0.0)
    y = lax.conv_general_dilated(a, w_down, (2, 2), ((1, 1), (1, 1)),
                                 dimension_numbers=('NCHW', 'OIHW', 'NCHW'),
                                 precision=lax.Precision.HIGHEST)
    z = jnp.maximum(y, 0.0)
    w_t = jnp.transpose(w_up, (1, 0, 2, 3))[:, :, ::-1, ::-1]
    up = lax.conv_general_dilated(z, w_t, (1, 1), ((1, 2), (1, 2)),
                                  lhs_dilation=(2, 2),
                                  dimension_numbers=('NCHW', 'OIHW', 'NCHW'),
                                  precision=lax.Precision.HIGHEST)
    mean = jnp.mean(up, axis=(0, 2, 3), keepdims=True)
    var = jnp.mean((up - mean) ** 2, axis=(0, 2, 3), keepdims=True)
    bn = ((up - mean) * lax.rsqrt(var + eps) * gamma.reshape(1, -1, 1, 1)
          + beta.reshape(1, -1, 1, 1))
    return jnp.concatenate([x, bn], axis=1)


if __name__ == "__main__":
    key = jax.random.PRNGKey(0)
    k1, k2, k3, k4 = jax.random.split(key, 4)

    N, outer_nc, inner_nc, H, W = 2, 4, 8, 16, 16
    input_nc = outer_nc  # input_nc=None in the module -> outer_nc

    x = jax.random.normal(k1, (N, input_nc, H, W), jnp.float32)
    # Conv2d(input_nc, inner_nc, 3): weight (inner, input, 3, 3), bias=False (BatchNorm)
    w_down = 0.1 * jax.random.normal(k2, (inner_nc, input_nc, 3, 3), jnp.float32)
    # ConvTranspose2d(inner_nc, outer_nc, 3): weight (inner, outer, 3, 3), bias=False
    w_up = 0.1 * jax.random.normal(k3, (inner_nc, outer_nc, 3, 3), jnp.float32)
    gamma = 1.0 + 0.1 * jax.random.normal(k4, (outer_nc,), jnp.float32)
    beta = jnp.linspace(-0.1, 0.1, outer_nc, dtype=jnp.float32)

    fwd = jax.jit(seg_v5_block_innermost)
    out = jax.block_until_ready(fwd(x, w_down, w_up, gamma, beta))
    assert out.shape == (N, input_nc + outer_nc, H, W), out.shape

    ref = ref_forward(x, w_down, w_up, gamma, beta)
    err = float(jnp.max(jnp.abs(out - ref)))
    # bf16 MXU inputs with f32 accumulation vs. an f32-HIGHEST reference.
    assert err < 5e-2, f"max abs err vs reference: {err}"

    print("KERNEL_OK")
</pallas_src>

<mosaic_0001>
module attributes {stable_mosaic.version = 11 : i64} {
  func.func @_stats_kernel(%arg0: i32, %arg1: memref<1x8x2x8x8xf32, #tpu.memory_space<vmem>>, %arg2: memref<36x8xbf16, #tpu.memory_space<vmem>>, %arg3: memref<32x16xbf16, #tpu.memory_space<vmem>>, %arg4: memref<1x2x16xf32, #tpu.memory_space<vmem>>) attributes {dimension_semantics = [#tpu.dimension_semantics<parallel>], iteration_bounds = array<i64: 2>, scalar_prefetch = 0 : i64, scratch_operands = 0 : i64, tpu.core_type = #tpu.core_type<tc>, window_params = [{transform_indices = @transform_0, window_bounds = array<i64: 1, 8, 2, 8, 8>}, {pipeline_mode = #tpu.pipeline_mode<synchronous>, transform_indices = @transform_1, window_bounds = array<i64: 36, 8>}, {pipeline_mode = #tpu.pipeline_mode<synchronous>, transform_indices = @transform_2, window_bounds = array<i64: 32, 16>}, {transform_indices = @transform_3, window_bounds = array<i64: 1, 2, 16>}]} {
    %c0 = arith.constant 0 : index
    %c0_0 = arith.constant 0 : index
    %c0_1 = arith.constant 0 : index
    %c0_2 = arith.constant 0 : index
    %c0_3 = arith.constant 0 : index
    %0 = vector.load %arg1[%c0, %c0_0, %c0_1, %c0_2, %c0_3] : memref<1x8x2x8x8xf32, #tpu.memory_space<vmem>>, vector<1x8x2x8x8xf32>
    %1 = vector.shape_cast %0 : vector<1x8x2x8x8xf32> to vector<8x2x8x8xf32>
    %2 = vector.extract_strided_slice %1 {offsets = [0, 0, 0, 0], sizes = [8, 1, 8, 4], strides = [1, 1, 1, 1]} : vector<8x2x8x8xf32> to vector<8x1x8x4xf32>
    %3 = vector.shape_cast %2 : vector<8x1x8x4xf32> to vector<8x8x4xf32>
    %cst = arith.constant 0.000000e+00 : f32
    %4 = vector.broadcast %cst : f32 to vector<8x8x4xf32>
    %5 = arith.maximumf %3, %4 : vector<8x8x4xf32>
    %6 = vector.extract_strided_slice %1 {offsets = [0, 0, 0, 4], sizes = [8, 1, 8, 4], strides = [1, 1, 1, 1]} : vector<8x2x8x8xf32> to vector<8x1x8x4xf32>
    %7 = vector.shape_cast %6 : vector<8x1x8x4xf32> to vector<8x8x4xf32>
    %cst_4 = arith.constant 0.000000e+00 : f32
    %8 = vector.broadcast %cst_4 : f32 to vector<8x8x4xf32>
    %9 = arith.maximumf %7, %8 : vector<8x8x4xf32>
    %10 = vector.extract_strided_slice %1 {offsets = [0, 1, 0, 0], sizes = [8, 1, 8, 4], strides = [1, 1, 1, 1]} : vector<8x2x8x8xf32> to vector<8x1x8x4xf32>
    %11 = vector.shape_cast %10 : vector<8x1x8x4xf32> to vector<8x8x4xf32>
    %cst_5 = arith.constant 0.000000e+00 : f32
    %12 = vector.broadcast %cst_5 : f32 to vector<8x8x4xf32>
    %13 = arith.maximumf %11, %12 : vector<8x8x4xf32>
    %14 = vector.extract_strided_slice %1 {offsets = [0, 1, 0, 4], sizes = [8, 1, 8, 4], strides = [1, 1, 1, 1]} : vector<8x2x8x8xf32> to vector<8x1x8x4xf32>
    %15 = vector.shape_cast %14 : vector<8x1x8x4xf32> to vector<8x8x4xf32>
    %cst_6 = arith.constant 0.000000e+00 : f32
    %16 = vector.broadcast %cst_6 : f32 to vector<8x8x4xf32>
    %17 = arith.maximumf %15, %16 : vector<8x8x4xf32>
    %cst_7 = arith.constant 0.000000e+00 : f32
    %18 = vector.broadcast %cst_7 : f32 to vector<8x1x4xf32>
    %cst_8 = arith.constant 0.000000e+00 : f32
    %19 = vector.broadcast %cst_8 : f32 to vector<1x8x4xf32>
    %20 = vector.extract_strided_slice %17 {offsets = [0, 0, 0], sizes = [8, 7, 4], strides = [1, 1, 1]} : vector<8x8x4xf32> to vector<8x7x4xf32>
    %21 = tpu.concatenate %18, %20 in 1 : vector<8x1x4xf32>, vector<8x7x4xf32> -> vector<8x8x4xf32>
    %22 = vector.extract_strided_slice %21 {offsets = [0, 0, 0], sizes = [7, 8, 4], strides = [1, 1, 1]} : vector<8x8x4xf32> to vector<7x8x4xf32>
    %23 = tpu.concatenate %19, %22 in 0 : vector<1x8x4xf32>, vector<7x8x4xf32> -> vector<8x8x4xf32>
    %24 = vector.shape_cast %23 : vector<8x8x4xf32> to vector<64x4xf32>
    %25 = vector.extract_strided_slice %13 {offsets = [0, 0, 0], sizes = [7, 8, 4], strides = [1, 1, 1]} : vector<8x8x4xf32> to vector<7x8x4xf32>
    %26 = tpu.concatenate %19, %25 in 0 : vector<1x8x4xf32>, vector<7x8x4xf32> -> vector<8x8x4xf32>
    %27 = vector.shape_cast %26 : vector<8x8x4xf32> to vector<64x4xf32>
    %28 = vector.extract_strided_slice %17 {offsets = [0, 0, 0], sizes = [7, 8, 4], strides = [1, 1, 1]} : vector<8x8x4xf32> to vector<7x8x4xf32>
    %29 = tpu.concatenate %19, %28 in 0 : vector<1x8x4xf32>, vector<7x8x4xf32> -> vector<8x8x4xf32>
    %30 = vector.shape_cast %29 : vector<8x8x4xf32> to vector<64x4xf32>
    %31 = vector.extract_strided_slice %9 {offsets = [0, 0, 0], sizes = [8, 7, 4], strides = [1, 1, 1]} : vector<8x8x4xf32> to vector<8x7x4xf32>
    %32 = tpu.concatenate %18, %31 in 1 : vector<8x1x4xf32>, vector<8x7x4xf32> -> vector<8x8x4xf32>
    %33 = vector.shape_cast %32 : vector<8x8x4xf32> to vector<64x4xf32>
    %34 = vector.shape_cast %5 : vector<8x8x4xf32> to vector<64x4xf32>
    %35 = vector.shape_cast %9 : vector<8x8x4xf32> to vector<64x4xf32>
    %36 = vector.extract_strided_slice %17 {offsets = [0, 0, 0], sizes = [8, 7, 4], strides = [1, 1, 1]} : vector<8x8x4xf32> to vector<8x7x4xf32>
    %37 = tpu.concatenate %18, %36 in 1 : vector<8x1x4xf32>, vector<8x7x4xf32> -> vector<8x8x4xf32>
    %38 = vector.shape_cast %37 : vector<8x8x4xf32> to vector<64x4xf32>
    %39 = vector.shape_cast %13 : vector<8x8x4xf32> to vector<64x4xf32>
    %40 = vector.shape_cast %17 : vector<8x8x4xf32> to vector<64x4xf32>
    %41 = tpu.concatenate %24, %27, %30, %33, %34, %35, %38, %39, %40 in 1 : vector<64x4xf32>, vector<64x4xf32>, vector<64x4xf32>, vector<64x4xf32>, vector<64x4xf32>, vector<64x4xf32>, vector<64x4xf32>, vector<64x4xf32>, vector<64x4xf32> -> vector<64x36xf32>
    %42 = arith.truncf %41 : vector<64x36xf32> to vector<64x36xbf16>
    %c0_9 = arith.constant 0 : index
    %c0_10 = arith.constant 0 : index
    %43 = vector.load %arg2[%c0_9, %c0_10] : memref<36x8xbf16, #tpu.memory_space<vmem>>, vector<36x8xbf16>
    %cst_11 = arith.constant dense<0.000000e+00> : vector<64x8xf32>
    %44 = tpu.matmul %42, %43, %cst_11 {dimension_numbers = #tpu.dot_dimension_numbers<[1], [0], [0], [1], [0, 0, 1, 1], [], []>} : vector<64x36xbf16>, vector<36x8xbf16>, vector<64x8xf32> -> vector<64x8xf32>
    %cst_12 = arith.constant 0.000000e+00 : f32
    %45 = vector.broadcast %cst_12 : f32 to vector<64x8xf32>
    %46 = arith.maximumf %44, %45 : vector<64x8xf32>
    %47 = vector.shape_cast %46 : vector<64x8xf32> to vector<8x8x8xf32>
    %cst_13 = arith.constant 0.000000e+00 : f32
    %48 = vector.broadcast %cst_13 : f32 to vector<8x1x8xf32>
    %cst_14 = arith.constant 0.000000e+00 : f32
    %49 = vector.broadcast %cst_14 : f32 to vector<1x8x8xf32>
    %50 = vector.extract_strided_slice %47 {offsets = [0, 1, 0], sizes = [8, 7, 8], strides = [1, 1, 1]} : vector<8x8x8xf32> to vector<8x7x8xf32>
    %51 = tpu.concatenate %50, %48 in 1 : vector<8x7x8xf32>, vector<8x1x8xf32> -> vector<8x8x8xf32>
    %52 = vector.extract_strided_slice %47 {offsets = [1, 0, 0], sizes = [7, 8, 8], strides = [1, 1, 1]} : vector<8x8x8xf32> to vector<7x8x8xf32>
    %53 = tpu.concatenate %52, %49 in 0 : vector<7x8x8xf32>, vector<1x8x8xf32> -> vector<8x8x8xf32>
    %54 = vector.extract_strided_slice %51 {offsets = [1, 0, 0], sizes = [7, 8, 8], strides = [1, 1, 1]} : vector<8x8x8xf32> to vector<7x8x8xf32>
    %55 = tpu.concatenate %54, %49 in 0 : vector<7x8x8xf32>, vector<1x8x8xf32> -> vector<8x8x8xf32>
    %56 = vector.shape_cast %47 : vector<8x8x8xf32> to vector<64x8xf32>
    %57 = vector.shape_cast %51 : vector<8x8x8xf32> to vector<64x8xf32>
    %58 = vector.shape_cast %53 : vector<8x8x8xf32> to vector<64x8xf32>
    %59 = vector.shape_cast %55 : vector<8x8x8xf32> to vector<64x8xf32>
    %60 = tpu.concatenate %56, %57, %58, %59 in 1 : vector<64x8xf32>, vector<64x8xf32>, vector<64x8xf32>, vector<64x8xf32> -> vector<64x32xf32>
    %61 = arith.truncf %60 : vector<64x32xf32> to vector<64x32xbf16>
    %c0_15 = arith.constant 0 : index
    %c0_16 = arith.constant 0 : index
    %62 = vector.load %arg3[%c0_15, %c0_16] : memref<32x16xbf16, #tpu.memory_space<vmem>>, vector<32x16xbf16>
    %cst_17 = arith.constant dense<0.000000e+00> : vector<64x16xf32>
    %63 = tpu.matmul %61, %62, %cst_17 {dimension_numbers = #tpu.dot_dimension_numbers<[1], [0], [0], [1], [0, 0, 1, 1], [], []>} : vector<64x32xbf16>, vector<32x16xbf16>, vector<64x16xf32> -> vector<64x16xf32>
    %cst_18 = arith.constant dense<0.000000e+00> : vector<16xf32>
    %64 = vector.multi_reduction <add>, %63, %cst_18 [0] : vector<64x16xf32> to vector<16xf32>
    %65 = vector.shape_cast %64 : vector<16xf32> to vector<1x16xf32>
    %cst_19 = arith.constant 1.562500e-02 : f32
    %66 = vector.broadcast %cst_19 : f32 to vector<1x16xf32>
    %67 = arith.mulf %65, %66 : vector<1x16xf32>
    %68 = vector.broadcast %67 : vector<1x16xf32> to vector<64x16xf32>
    %69 = arith.subf %63, %68 : vector<64x16xf32>
    %70 = arith.mulf %69, %69 : vector<64x16xf32>
    %cst_20 = arith.constant dense<0.000000e+00> : vector<16xf32>
    %71 = vector.multi_reduction <add>, %70, %cst_20 [0] : vector<64x16xf32> to vector<16xf32>
    %72 = vector.shape_cast %71 : vector<16xf32> to vector<1x16xf32>
    %c0_21 = arith.constant 0 : index
    %c0_22 = arith.constant 0 : index
    %c0_23 = arith.constant 0 : index
    %73 = vector.load %arg4[%c0_21, %c0_22, %c0_23] : memref<1x2x16xf32, #tpu.memory_space<vmem>>, vector<1x1x16xf32>
    %74 = vector.shape_cast %73 : vector<1x1x16xf32> to vector<1x16xf32>
    %75 = vector.shape_cast %65 : vector<1x16xf32> to vector<1x1x16xf32>
    tpu.vector_store %arg4[%c0_21, %c0_22, %c0_23], %75 {strides = array<i32>} : memref<1x2x16xf32, #tpu.memory_space<vmem>>, vector<1x1x16xf32>,
    %c0_24 = arith.constant 0 : index
    %c1 = arith.constant 1 : index
    %c0_25 = arith.constant 0 : index
    %76 = vector.load %arg4[%c0_24, %c1, %c0_25] : memref<1x2x16xf32, #tpu.memory_space<vmem>>, vector<1x1x16xf32>
    %77 = vector.shape_cast %76 : vector<1x1x16xf32> to vector<1x16xf32>
    %78 = vector.shape_cast %72 : vector<1x16xf32> to vector<1x1x16xf32>
    tpu.vector_store %arg4[%c0_24, %c1, %c0_25], %78 {strides = array<i32>} : memref<1x2x16xf32, #tpu.memory_space<vmem>>, vector<1x1x16xf32>,
    return
  }
  func.func @transform_0(%arg0: i32) -> (i32, i32, i32, i32, i32) {
    %c0_i32 = arith.constant 0 : i32
    %c0_i32_0 = arith.constant 0 : i32
    %c0_i32_1 = arith.constant 0 : i32
    %c0_i32_2 = arith.constant 0 : i32
    %c0_i32_3 = arith.constant 0 : i32
    return %arg0, %c0_i32, %c0_i32_0, %c0_i32_1, %c0_i32_2 : i32, i32, i32, i32, i32
  }
  func.func @transform_1(%arg0: i32) -> (i32, i32) {
    %c0_i32 = arith.constant 0 : i32
    %c0_i32_0 = arith.constant 0 : i32
    %c0_i32_1 = arith.constant 0 : i32
    return %c0_i32, %c0_i32_0 : i32, i32
  }
  func.func @transform_2(%arg0: i32) -> (i32, i32) {
    %c0_i32 = arith.constant 0 : i32
    %c0_i32_0 = arith.constant 0 : i32
    %c0_i32_1 = arith.constant 0 : i32
    return %c0_i32, %c0_i32_0 : i32, i32
  }
  func.func @transform_3(%arg0: i32) -> (i32, i32, i32) {
    %c0_i32 = arith.constant 0 : i32
    %c0_i32_0 = arith.constant 0 : i32
    %c0_i32_1 = arith.constant 0 : i32
    return %arg0, %c0_i32, %c0_i32_0 : i32, i32, i32
  }
}

module attributes {stable_mosaic.version = 11 : i64} {
  func.func @_bn_concat_kernel(%arg0: i32, %arg1: memref<1x8x2x8x8xf32, #tpu.memory_space<vmem>>, %arg2: memref<36x8xbf16, #tpu.memory_space<vmem>>, %arg3: memref<32x16xbf16, #tpu.memory_space<vmem>>, %arg4: memref<1x16xf32, #tpu.memory_space<vmem>>, %arg5: memref<1x16xf32, #tpu.memory_space<vmem>>, %arg6: memref<1x8x2x8x16xf32, #tpu.memory_space<vmem>>) attributes {dimension_semantics = [#tpu.dimension_semantics<parallel>], iteration_bounds = array<i64: 2>, scalar_prefetch = 0 : i64, scratch_operands = 0 : i64, tpu.core_type = #tpu.core_type<tc>, window_params = [{transform_indices = @transform_0, window_bounds = array<i64: 1, 8, 2, 8, 8>}, {pipeline_mode = #tpu.pipeline_mode<synchronous>, transform_indices = @transform_1, window_bounds = array<i64: 36, 8>}, {pipeline_mode = #tpu.pipeline_mode<synchronous>, transform_indices = @transform_2, window_bounds = array<i64: 32, 16>}, {pipeline_mode = #tpu.pipeline_mode<synchronous>, transform_indices = @transform_3, window_bounds = array<i64: 1, 16>}, {pipeline_mode = #tpu.pipeline_mode<synchronous>, transform_indices = @transform_4, window_bounds = array<i64: 1, 16>}, {transform_indices = @transform_5, window_bounds = array<i64: 1, 8, 2, 8, 16>}]} {
    %c0 = arith.constant 0 : index
    %c0_0 = arith.constant 0 : index
    %c0_1 = arith.constant 0 : index
    %c0_2 = arith.constant 0 : index
    %c0_3 = arith.constant 0 : index
    %0 = vector.load %arg1[%c0, %c0_0, %c0_1, %c0_2, %c0_3] : memref<1x8x2x8x8xf32, #tpu.memory_space<vmem>>, vector<1x8x2x8x8xf32>
    %1 = vector.shape_cast %0 : vector<1x8x2x8x8xf32> to vector<8x2x8x8xf32>
    %2 = vector.extract_strided_slice %1 {offsets = [0, 0, 0, 0], sizes = [8, 1, 8, 4], strides = [1, 1, 1, 1]} : vector<8x2x8x8xf32> to vector<8x1x8x4xf32>
    %3 = vector.shape_cast %2 : vector<8x1x8x4xf32> to vector<8x8x4xf32>
    %cst = arith.constant 0.000000e+00 : f32
    %4 = vector.broadcast %cst : f32 to vector<8x8x4xf32>
    %5 = arith.maximumf %3, %4 : vector<8x8x4xf32>
    %6 = vector.extract_strided_slice %1 {offsets = [0, 0, 0, 4], sizes = [8, 1, 8, 4], strides = [1, 1, 1, 1]} : vector<8x2x8x8xf32> to vector<8x1x8x4xf32>
    %7 = vector.shape_cast %6 : vector<8x1x8x4xf32> to vector<8x8x4xf32>
    %cst_4 = arith.constant 0.000000e+00 : f32
    %8 = vector.broadcast %cst_4 : f32 to vector<8x8x4xf32>
    %9 = arith.maximumf %7, %8 : vector<8x8x4xf32>
    %10 = vector.extract_strided_slice %1 {offsets = [0, 1, 0, 0], sizes = [8, 1, 8, 4], strides = [1, 1, 1, 1]} : vector<8x2x8x8xf32> to vector<8x1x8x4xf32>
    %11 = vector.shape_cast %10 : vector<8x1x8x4xf32> to vector<8x8x4xf32>
    %cst_5 = arith.constant 0.000000e+00 : f32
    %12 = vector.broadcast %cst_5 : f32 to vector<8x8x4xf32>
    %13 = arith.maximumf %11, %12 : vector<8x8x4xf32>
    %14 = vector.extract_strided_slice %1 {offsets = [0, 1, 0, 4], sizes = [8, 1, 8, 4], strides = [1, 1, 1, 1]} : vector<8x2x8x8xf32> to vector<8x1x8x4xf32>
    %15 = vector.shape_cast %14 : vector<8x1x8x4xf32> to vector<8x8x4xf32>
    %cst_6 = arith.constant 0.000000e+00 : f32
    %16 = vector.broadcast %cst_6 : f32 to vector<8x8x4xf32>
    %17 = arith.maximumf %15, %16 : vector<8x8x4xf32>
    %cst_7 = arith.constant 0.000000e+00 : f32
    %18 = vector.broadcast %cst_7 : f32 to vector<8x1x4xf32>
    %cst_8 = arith.constant 0.000000e+00 : f32
    %19 = vector.broadcast %cst_8 : f32 to vector<1x8x4xf32>
    %20 = vector.extract_strided_slice %17 {offsets = [0, 0, 0], sizes = [8, 7, 4], strides = [1, 1, 1]} : vector<8x8x4xf32> to vector<8x7x4xf32>
    %21 = tpu.concatenate %18, %20 in 1 : vector<8x1x4xf32>, vector<8x7x4xf32> -> vector<8x8x4xf32>
    %22 = vector.extract_strided_slice %21 {offsets = [0, 0, 0], sizes = [7, 8, 4], strides = [1, 1, 1]} : vector<8x8x4xf32> to vector<7x8x4xf32>
    %23 = tpu.concatenate %19, %22 in 0 : vector<1x8x4xf32>, vector<7x8x4xf32> -> vector<8x8x4xf32>
    %24 = vector.shape_cast %23 : vector<8x8x4xf32> to vector<64x4xf32>
    %25 = vector.extract_strided_slice %13 {offsets = [0, 0, 0], sizes = [7, 8, 4], strides = [1, 1, 1]} : vector<8x8x4xf32> to vector<7x8x4xf32>
    %26 = tpu.concatenate %19, %25 in 0 : vector<1x8x4xf32>, vector<7x8x4xf32> -> vector<8x8x4xf32>
    %27 = vector.shape_cast %26 : vector<8x8x4xf32> to vector<64x4xf32>
    %28 = vector.extract_strided_slice %17 {offsets = [0, 0, 0], sizes = [7, 8, 4], strides = [1, 1, 1]} : vector<8x8x4xf32> to vector<7x8x4xf32>
    %29 = tpu.concatenate %19, %28 in 0 : vector<1x8x4xf32>, vector<7x8x4xf32> -> vector<8x8x4xf32>
    %30 = vector.shape_cast %29 : vector<8x8x4xf32> to vector<64x4xf32>
    %31 = vector.extract_strided_slice %9 {offsets = [0, 0, 0], sizes = [8, 7, 4], strides = [1, 1, 1]} : vector<8x8x4xf32> to vector<8x7x4xf32>
    %32 = tpu.concatenate %18, %31 in 1 : vector<8x1x4xf32>, vector<8x7x4xf32> -> vector<8x8x4xf32>
    %33 = vector.shape_cast %32 : vector<8x8x4xf32> to vector<64x4xf32>
    %34 = vector.shape_cast %5 : vector<8x8x4xf32> to vector<64x4xf32>
    %35 = vector.shape_cast %9 : vector<8x8x4xf32> to vector<64x4xf32>
    %36 = vector.extract_strided_slice %17 {offsets = [0, 0, 0], sizes = [8, 7, 4], strides = [1, 1, 1]} : vector<8x8x4xf32> to vector<8x7x4xf32>
    %37 = tpu.concatenate %18, %36 in 1 : vector<8x1x4xf32>, vector<8x7x4xf32> -> vector<8x8x4xf32>
    %38 = vector.shape_cast %37 : vector<8x8x4xf32> to vector<64x4xf32>
    %39 = vector.shape_cast %13 : vector<8x8x4xf32> to vector<64x4xf32>
    %40 = vector.shape_cast %17 : vector<8x8x4xf32> to vector<64x4xf32>
    %41 = tpu.concatenate %24, %27, %30, %33, %34, %35, %38, %39, %40 in 1 : vector<64x4xf32>, vector<64x4xf32>, vector<64x4xf32>, vector<64x4xf32>, vector<64x4xf32>, vector<64x4xf32>, vector<64x4xf32>, vector<64x4xf32>, vector<64x4xf32> -> vector<64x36xf32>
    %42 = arith.truncf %41 : vector<64x36xf32> to vector<64x36xbf16>
    %c0_9 = arith.constant 0 : index
    %c0_10 = arith.constant 0 : index
    %43 = vector.load %arg2[%c0_9, %c0_10] : memref<36x8xbf16, #tpu.memory_space<vmem>>, vector<36x8xbf16>
    %cst_11 = arith.constant dense<0.000000e+00> : vector<64x8xf32>
    %44 = tpu.matmul %42, %43, %cst_11 {dimension_numbers = #tpu.dot_dimension_numbers<[1], [0], [0], [1], [0, 0, 1, 1], [], []>} : vector<64x36xbf16>, vector<36x8xbf16>, vector<64x8xf32> -> vector<64x8xf32>
    %cst_12 = arith.constant 0.000000e+00 : f32
    %45 = vector.broadcast %cst_12 : f32 to vector<64x8xf32>
    %46 = arith.maximumf %44, %45 : vector<64x8xf32>
    %47 = vector.shape_cast %46 : vector<64x8xf32> to vector<8x8x8xf32>
    %cst_13 = arith.constant 0.000000e+00 : f32
    %48 = vector.broadcast %cst_13 : f32 to vector<8x1x8xf32>
    %cst_14 = arith.constant 0.000000e+00 : f32
    %49 = vector.broadcast %cst_14 : f32 to vector<1x8x8xf32>
    %50 = vector.extract_strided_slice %47 {offsets = [0, 1, 0], sizes = [8, 7, 8], strides = [1, 1, 1]} : vector<8x8x8xf32> to vector<8x7x8xf32>
    %51 = tpu.concatenate %50, %48 in 1 : vector<8x7x8xf32>, vector<8x1x8xf32> -> vector<8x8x8xf32>
    %52 = vector.extract_strided_slice %47 {offsets = [1, 0, 0], sizes = [7, 8, 8], strides = [1, 1, 1]} : vector<8x8x8xf32> to vector<7x8x8xf32>
    %53 = tpu.concatenate %52, %49 in 0 : vector<7x8x8xf32>, vector<1x8x8xf32> -> vector<8x8x8xf32>
    %54 = vector.extract_strided_slice %51 {offsets = [1, 0, 0], sizes = [7, 8, 8], strides = [1, 1, 1]} : vector<8x8x8xf32> to vector<7x8x8xf32>
    %55 = tpu.concatenate %54, %49 in 0 : vector<7x8x8xf32>, vector<1x8x8xf32> -> vector<8x8x8xf32>
    %56 = vector.shape_cast %47 : vector<8x8x8xf32> to vector<64x8xf32>
    %57 = vector.shape_cast %51 : vector<8x8x8xf32> to vector<64x8xf32>
    %58 = vector.shape_cast %53 : vector<8x8x8xf32> to vector<64x8xf32>
    %59 = vector.shape_cast %55 : vector<8x8x8xf32> to vector<64x8xf32>
    %60 = tpu.concatenate %56, %57, %58, %59 in 1 : vector<64x8xf32>, vector<64x8xf32>, vector<64x8xf32>, vector<64x8xf32> -> vector<64x32xf32>
    %61 = arith.truncf %60 : vector<64x32xf32> to vector<64x32xbf16>
    %c0_15 = arith.constant 0 : index
    %c0_16 = arith.constant 0 : index
    %62 = vector.load %arg3[%c0_15, %c0_16] : memref<32x16xbf16, #tpu.memory_space<vmem>>, vector<32x16xbf16>
    %cst_17 = arith.constant dense<0.000000e+00> : vector<64x16xf32>
    %63 = tpu.matmul %61, %62, %cst_17 {dimension_numbers = #tpu.dot_dimension_numbers<[1], [0], [0], [1], [0, 0, 1, 1], [], []>} : vector<64x32xbf16>, vector<32x16xbf16>, vector<64x16xf32> -> vector<64x16xf32>
    %c0_18 = arith.constant 0 : index
    %c0_19 = arith.constant 0 : index
    %64 = vector.load %arg4[%c0_18, %c0_19] : memref<1x16xf32, #tpu.memory_space<vmem>>, vector<1x16xf32>
    %65 = vector.broadcast %64 : vector<1x16xf32> to vector<64x16xf32>
    %66 = arith.mulf %63, %65 : vector<64x16xf32>
    %c0_20 = arith.constant 0 : index
    %c0_21 = arith.constant 0 : index
    %67 = vector.load %arg5[%c0_20, %c0_21] : memref<1x16xf32, #tpu.memory_space<vmem>>, vector<1x16xf32>
    %68 = vector.broadcast %67 : vector<1x16xf32> to vector<64x16xf32>
    %69 = arith.addf %66, %68 : vector<64x16xf32>
    %70 = vector.extract_strided_slice %69 {offsets = [0, 0], sizes = [64, 8], strides = [1, 1]} : vector<64x16xf32> to vector<64x8xf32>
    %71 = vector.shape_cast %70 : vector<64x8xf32> to vector<8x8x8xf32>
    %72 = vector.extract_strided_slice %1 {offsets = [0, 0, 0, 0], sizes = [8, 1, 8, 8], strides = [1, 1, 1, 1]} : vector<8x2x8x8xf32> to vector<8x1x8x8xf32>
    %73 = vector.shape_cast %72 : vector<8x1x8x8xf32> to vector<8x8x8xf32>
    %74 = vector.extract_strided_slice %73 {offsets = [0, 0, 0], sizes = [8, 8, 4], strides = [1, 1, 1]} : vector<8x8x8xf32> to vector<8x8x4xf32>
    %75 = vector.extract_strided_slice %71 {offsets = [0, 0, 0], sizes = [8, 8, 4], strides = [1, 1, 1]} : vector<8x8x8xf32> to vector<8x8x4xf32>
    %76 = vector.extract_strided_slice %73 {offsets = [0, 0, 4], sizes = [8, 8, 4], strides = [1, 1, 1]} : vector<8x8x8xf32> to vector<8x8x4xf32>
    %77 = vector.extract_strided_slice %71 {offsets = [0, 0, 4], sizes = [8, 8, 4], strides = [1, 1, 1]} : vector<8x8x8xf32> to vector<8x8x4xf32>
    %78 = tpu.concatenate %74, %75, %76, %77 in 2 : vector<8x8x4xf32>, vector<8x8x4xf32>, vector<8x8x4xf32>, vector<8x8x4xf32> -> vector<8x8x16xf32>
    %c0_22 = arith.constant 0 : index
    %c0_23 = arith.constant 0 : index
    %c0_24 = arith.constant 0 : index
    %c0_25 = arith.constant 0 : index
    %c0_26 = arith.constant 0 : index
    %79 = vector.load %arg6[%c0_22, %c0_23, %c0_24, %c0_25, %c0_26] : memref<1x8x2x8x16xf32, #tpu.memory_space<vmem>>, vector<1x8x1x8x16xf32>
    %80 = vector.shape_cast %79 : vector<1x8x1x8x16xf32> to vector<8x8x16xf32>
    %81 = vector.shape_cast %78 : vector<8x8x16xf32> to vector<1x8x1x8x16xf32>
    tpu.vector_store %arg6[%c0_22, %c0_23, %c0_24, %c0_25, %c0_26], %81 {strides = array<i32>} : memref<1x8x2x8x16xf32, #tpu.memory_space<vmem>>, vector<1x8x1x8x16xf32>,
    %82 = vector.extract_strided_slice %69 {offsets = [0, 8], sizes = [64, 8], strides = [1, 1]} : vector<64x16xf32> to vector<64x8xf32>
    %83 = vector.shape_cast %82 : vector<64x8xf32> to vector<8x8x8xf32>
    %84 = vector.extract_strided_slice %1 {offsets = [0, 1, 0, 0], sizes = [8, 1, 8, 8], strides = [1, 1, 1, 1]} : vector<8x2x8x8xf32> to vector<8x1x8x8xf32>
    %85 = vector.shape_cast %84 : vector<8x1x8x8xf32> to vector<8x8x8xf32>
    %86 = vector.extract_strided_slice %85 {offsets = [0, 0, 0], sizes = [8, 8, 4], strides = [1, 1, 1]} : vector<8x8x8xf32> to vector<8x8x4xf32>
    %87 = vector.extract_strided_slice %83 {offsets = [0, 0, 0], sizes = [8, 8, 4], strides = [1, 1, 1]} : vector<8x8x8xf32> to vector<8x8x4xf32>
    %88 = vector.extract_strided_slice %85 {offsets = [0, 0, 4], sizes = [8, 8, 4], strides = [1, 1, 1]} : vector<8x8x8xf32> to vector<8x8x4xf32>
    %89 = vector.extract_strided_slice %83 {offsets = [0, 0, 4], sizes = [8, 8, 4], strides = [1, 1, 1]} : vector<8x8x8xf32> to vector<8x8x4xf32>
    %90 = tpu.concatenate %86, %87, %88, %89 in 2 : vector<8x8x4xf32>, vector<8x8x4xf32>, vector<8x8x4xf32>, vector<8x8x4xf32> -> vector<8x8x16xf32>
    %c0_27 = arith.constant 0 : index
    %c0_28 = arith.constant 0 : index
    %c1 = arith.constant 1 : index
    %c0_29 = arith.constant 0 : index
    %c0_30 = arith.constant 0 : index
    %91 = vector.load %arg6[%c0_27, %c0_28, %c1, %c0_29, %c0_30] : memref<1x8x2x8x16xf32, #tpu.memory_space<vmem>>, vector<1x8x1x8x16xf32>
    %92 = vector.shape_cast %91 : vector<1x8x1x8x16xf32> to vector<8x8x16xf32>
    %93 = vector.shape_cast %90 : vector<8x8x16xf32> to vector<1x8x1x8x16xf32>
    tpu.vector_store %arg6[%c0_27, %c0_28, %c1, %c0_29, %c0_30], %93 {strides = array<i32>} : memref<1x8x2x8x16xf32, #tpu.memory_space<vmem>>, vector<1x8x1x8x16xf32>,
    return
  }
  func.func @transform_0(%arg0: i32) -> (i32, i32, i32, i32, i32) {
    %c0_i32 = arith.constant 0 : i32
    %c0_i32_0 = arith.constant 0 : i32
    %c0_i32_1 = arith.constant 0 : i32
    %c0_i32_2 = arith.constant 0 : i32
    %c0_i32_3 = arith.constant 0 : i32
    return %arg0, %c0_i32, %c0_i32_0, %c0_i32_1, %c0_i32_2 : i32, i32, i32, i32, i32
  }
  func.func @transform_1(%arg0: i32) -> (i32, i32) {
    %c0_i32 = arith.constant 0 : i32
    %c0_i32_0 = arith.constant 0 : i32
    %c0_i32_1 = arith.constant 0 : i32
    return %c0_i32, %c0_i32_0 : i32, i32
  }
  func.func @transform_2(%arg0: i32) -> (i32, i32) {
    %c0_i32 = arith.constant 0 : i32
    %c0_i32_0 = arith.constant 0 : i32
    %c0_i32_1 = arith.constant 0 : i32
    return %c0_i32, %c0_i32_0 : i32, i32
  }
  func.func @transform_3(%arg0: i32) -> (i32, i32) {
    %c0_i32 = arith.constant 0 : i32
    %c0_i32_0 = arith.constant 0 : i32
    %c0_i32_1 = arith.constant 0 : i32
    return %c0_i32, %c0_i32_0 : i32, i32
  }
  func.func @transform_4(%arg0: i32) -> (i32, i32) {
    %c0_i32 = arith.constant 0 : i32
    %c0_i32_0 = arith.constant 0 : i32
    %c0_i32_1 = arith.constant 0 : i32
    return %c0_i32, %c0_i32_0 : i32, i32
  }
  func.func @transform_5(%arg0: i32) -> (i32, i32, i32, i32, i32) {
    %c0_i32 = arith.constant 0 : i32
    %c0_i32_0 = arith.constant 0 : i32
    %c0_i32_1 = arith.constant 0 : i32
    %c0_i32_2 = arith.constant 0 : i32
    %c0_i32_3 = arith.constant 0 : i32
    return %arg0, %c0_i32, %c0_i32_0, %c0_i32_1, %c0_i32_2 : i32, i32, i32, i32, i32
  }
}

</mosaic_0001>

<llo_original>
// kernel: tile.13
$region0: #{tile.13}
  #allocation0 [shape = 's32[1]{0}', space=sflag, size = 0x4, scoped, tag = 'scoped memory for tile.13']
  %s0 = inlined_call_operand.vmem [shape: f32[4], index: 0, kind: input, shape index: {}]
  %s1 = inlined_call_operand.vmem [shape: f32[4,4], index: 1, kind: output, shape index: {}]
  // Predicated region
  $region2: #{tile.13} parent=0 // pred_check
    _
  $region3: #{tile.13} parent=0 // pred_check_branch
    %3 = sbr.rel (0) target = $region5
  $region4: #{tile.13} parent=0 // pred_region
    _
  $region5: #{tile.13} parent=0 // pred_fallthru
    _
  %v4 = vld [vmem:[%s0] ss:$0 sm:$0xff]
  %5 = vst [vmem:[%s1] sm:$0xf] %v4

// kernel: tile.14
$region0: #{tile.14}
  %s0 = inlined_call_operand.vmem [shape: f32[4,4], index: 0, kind: input, shape index: {}]
  %s1 = inlined_call_operand.vmem [shape: f32[1,16], index: 1, kind: output, shape index: {}]
  $region1: #{tile.14} parent=0
    #allocation0 [shape = 'u8[4096]{0}', space=vmem, size = 0x1000, scoped, tag = 'scoped mem for output reshape']
    #allocation1 [shape = 'u8[4096]{0}', space=vmem, size = 0x1000, scoped, tag = 'scoped mem for input reshape']
    %s3 = sshll.u32 1, 4
    %s4 = ssub.s32 %s3, 1
    %v5 = vld [vmem:[%s0] sm:%s4]
    %6 = vst [vmem:[#allocation1] sm:%s4] %v5
    %v7 = vld [vmem:[#allocation1] sm:$0x1]
    %vm8 = vcmask 31744
    %9 = vst.msk [vmem:[#allocation0] sm:$0x1] %vm8, %v7
    %s10 = scalar_lea.vmem [#allocation1], 3
    %v11 = vld [vmem:[%s10] sm:$0x1]
    %12 = vrot.lane.b32.xlu0 %v11, 12
    %v13 = vpop.permute.xlu0 %12
    %vm14 = vcmask 130144
    %15 = vst.msk [vmem:[#allocation0] sm:$0x1] %vm14, %v13
    %s16 = scalar_lea.vmem [#allocation1], 2
    %v17 = vld [vmem:[%s16] sm:$0x1]
    %18 = vrot.lane.b32.xlu0 %v17, 8
    %v19 = vpop.permute.xlu0 %18
    %vm20 = vcmask 97344
    %21 = vst.msk [vmem:[#allocation0] sm:$0x1] %vm20, %v19
    %s22 = scalar_lea.vmem [#allocation1], 1
    %v23 = vld [vmem:[%s22] sm:$0x1]
    %24 = vrot.lane.b32.xlu0 %v23, 4
    %v25 = vpop.permute.xlu0 %24
    %vm26 = vcmask 64544
    %27 = vst.msk [vmem:[#allocation0] sm:$0x1] %vm26, %v25
    %s29 = sshll.u32 1, 1
    %s30 = ssub.s32 %s29, 1
    %v32 = vld [vmem:[#allocation0] sm:%s30]
    %s33 = sshll.u32 1, 1
    %s34 = ssub.s32 %s33, 1
    %35 = vst [vmem:[%s1] sm:%s34] %v32

// kernel: seg_v5_block_innermost.2
$region0: #{seg_v5_block_innermost.2}
  #allocation0 [shape = 'u32[]', space=smem, size = 0x4, offset = 0x4, fixed_abs, tag = 'smem constant byte address 0x4 - core index']
  #allocation1 [shape = 'u32[144,128]{1,0:T(1,128)}', space=vmem, size = 0x12000, scoped, tag = 'internal scratch']
  %s0 = inlined_call_operand.vmem [shape: f32[2,8,2,8,8], index: 0, kind: input, shape index: {}]
  %s1 = inlined_call_operand.vmem [shape: bf16[36,8], index: 1, kind: input, shape index: {}]
  %s2 = inlined_call_operand.vmem [shape: bf16[32,16], index: 2, kind: input, shape index: {}]
  %s3 = inlined_call_operand.vmem [shape: f32[2,2,16], index: 3, kind: output, shape index: {}]
  %s4 = sld [smem:[#allocation0]]
  $region45: #{seg_v5_block_innermost.2} parent=0
    _
  %s6 = ssub.s32 1, %s4
  %s7 = scalar_select 0, %s6, %s4
  loop: start=0, step=1, limit=4
  $region2: #{seg_v5_block_innermost.2} parent=0 // loop_pre_header
    _
  $region3: #{seg_v5_block_innermost.2} parent=0 // loop_header
    %s9 = sphi 0, %s13
    %p10 = scmp.ge.s32.totalorder %s9, 4
    %s19 = sphi 0, %s21
    %s22 = sphi 0, %s19
    %s23 = sphi 0, %s22
    %s39 = sphi 0, %s23
    %s43 = sphi 0, %s43
    %s45 = sphi 0, %s43
    %s46 = sphi 0, %s45
    %s60 = sphi 0, %s46
    %s64 = sphi 0, %s64
    %s66 = sphi 0, %s64
    %s67 = sphi 0, %s66
    %s81 = sphi 0, %s67
    %s87 = sphi 0, %s89
    %s90 = sphi 0, %s87
    %s91 = sphi 0, %s90
    %s107 = sphi 0, %s91
  $region4: #{seg_v5_block_innermost.2} parent=0 // loop_header_branch
    %12 = sbr.rel (%p10) target = $region8
  $region5: #{seg_v5_block_innermost.2} parent=0 // loop_body
    %s14 = ssub.s32 %s9, 1
    %s15 = ssub.s32 %s9, 2
    %s16 = sadd.s32 %s9, 1
    %s17 = ssub.s32 %s9, %s16
    %p18 = scmp.eq.s32.totalorder %s17, 0
    %s20 = sadd.s32 %s19, 1
    %s21 = scalar_select %p18, %s19, %s20
    %p24 = pneg %p18
    %p25 = scmp.eq.s32.totalorder %s9, 1
    %p26 = por %p24, %p25
    %p27 = scmp.ne.s32.totalorder %s19, %s22
    %p28 = scmp.eq.s32.totalorder %s9, 0
    %p29 = por %p27, %p28
    %p30 = scmp.ne.s32.totalorder %s19, %s22
    %p31 = scmp.eq.s32.totalorder %s14, 1
    %p32 = por %p30, %p31
    %p33 = scmp.ne.s32.totalorder %s22, %s23
    %p34 = scmp.eq.s32.totalorder %s14, 0
    %p35 = por %p33, %p34
    %p36 = scmp.ne.s32.totalorder %s22, %s23
    %p37 = scmp.eq.s32.totalorder %s15, 1
    %p38 = por %p36, %p37
    %p40 = scmp.ne.s32.totalorder %s23, %s39
    %p41 = scmp.eq.s32.totalorder %s15, 0
    %p42 = por %p40, %p41
    %s44 = sadd.s32 %s43, 1
    %p47 = scmp.eq.s32.totalorder %s9, 1
    %p48 = scmp.ne.s32.totalorder %s43, %s45
    %p49 = scmp.eq.s32.totalorder %s9, 0
    %p50 = por %p48, %p49
    %p51 = scmp.ne.s32.totalorder %s43, %s45
    %p52 = scmp.eq.s32.totalorder %s14, 1
    %p53 = por %p51, %p52
    %p54 = scmp.ne.s32.totalorder %s45, %s46
    %p55 = scmp.eq.s32.totalorder %s14, 0
    %p56 = por %p54, %p55
    %p57 = scmp.ne.s32.totalorder %s45, %s46
    %p58 = scmp.eq.s32.totalorder %s15, 1
    %p59 = por %p57, %p58
    %p61 = scmp.ne.s32.totalorder %s46, %s60
    %p62 = scmp.eq.s32.totalorder %s15, 0
    %p63 = por %p61, %p62
    %s65 = sadd.s32 %s64, 1
    %p68 = scmp.eq.s32.totalorder %s9, 1
    %p69 = scmp.ne.s32.totalorder %s64, %s66
    %p70 = scmp.eq.s32.totalorder %s9, 0
    %p71 = por %p69, %p70
    %p72 = scmp.ne.s32.totalorder %s64, %s66
    %p73 = scmp.eq.s32.totalorder %s14, 1
    %p74 = por %p72, %p73
    %p75 = scmp.ne.s32.totalorder %s66, %s67
    %p76 = scmp.eq.s32.totalorder %s14, 0
    %p77 = por %p75, %p76
    %p78 = scmp.ne.s32.totalorder %s66, %s67
    %p79 = scmp.eq.s32.totalorder %s15, 1
    %p80 = por %p78, %p79
    %p82 = scmp.ne.s32.totalorder %s67, %s81
    %p83 = scmp.eq.s32.totalorder %s15, 0
    %p84 = por %p82, %p83
    %s85 = ssub.s32 %s9, %s16
    %p86 = scmp.eq.s32.totalorder %s85, 0
    %s88 = sadd.s32 %s87, 1
    %s89 = scalar_select %p86, %s87, %s88
    %p92 = pneg %p86
    %p93 = scmp.eq.s32.totalorder %s9, 1
    %p94 = por %p92, %p93
    %p95 = scmp.ne.s32.totalorder %s87, %s90
    %p96 = scmp.eq.s32.totalorder %s9, 0
    %p97 = por %p95, %p96
    %p98 = scmp.ne.s32.totalorder %s87, %s90
    %p99 = scmp.eq.s32.totalorder %s14, 1
    %p100 = por %p98, %p99
    %p101 = scmp.ne.s32.totalorder %s90, %s91
    %p102 = scmp.eq.s32.totalorder %s14, 0
    %p103 = por %p101, %p102
    %p104 = scmp.ne.s32.totalorder %s90, %s91
    %p105 = scmp.eq.s32.totalorder %s15, 1
    %p106 = por %p104, %p105
    %p108 = scmp.ne.s32.totalorder %s91, %s107
    %p109 = scmp.eq.s32.totalorder %s15, 0
    %p110 = por %p108, %p109
    %p111 = scmp.le.s32.totalorder 1, %s9
    %p112 = scmp.lt.s32.totalorder %s9, 3
    %p113 = pnand %p111, %p112
    %p114 = pneg %p113
    // Predicated region
    $region9: #{seg_v5_block_innermost.2} parent=5 // pred_check
      _
    $region10: #{seg_v5_block_innermost.2} parent=5 // pred_check_branch
      %116 = sbr.rel (%p113) target = $region12
    $region11: #{seg_v5_block_innermost.2} parent=5 // pred_region
      %s117 = ssub.s32 %s9, 1
      // Predicated region
      $region13: #{seg_v5_block_innermost.2} parent=11 // pred_check
        %p118 = pneg %p56
      $region14: #{seg_v5_block_innermost.2} parent=11 // pred_check_branch
        %120 = sbr.rel (%p118) target = $region16
      $region15: #{seg_v5_block_innermost.2} parent=11 // pred_region
        _
      $region16: #{seg_v5_block_innermost.2} parent=11 // pred_fallthru
        _
      // Predicated region
      $region17: #{seg_v5_block_innermost.2} parent=11 // pred_check
        %p121 = pneg %p77
      $region18: #{seg_v5_block_innermost.2} parent=11 // pred_check_branch
        %123 = sbr.rel (%p121) target = $region20
      $region19: #{seg_v5_block_innermost.2} parent=11 // pred_region
        _
      $region20: #{seg_v5_block_innermost.2} parent=11 // pred_fallthru
        _
    $region12: #{seg_v5_block_innermost.2} parent=5 // pred_fallthru
      _
    %p124 = scmp.lt.s32.totalorder %s9, 2
    // Predicated region
    $region21: #{seg_v5_block_innermost.2} parent=5 // pred_check
      %p125 = pneg %p124
    $region22: #{seg_v5_block_innermost.2} parent=5 // pred_check_branch
      %127 = sbr.rel (%p125) target = $region24
    $region23: #{seg_v5_block_innermost.2} parent=5 // pred_region
      // Predicated region
      $region25: #{seg_v5_block_innermost.2} parent=23 // pred_check
        %p128 = pneg %p29
      $region26: #{seg_v5_block_innermost.2} parent=23 // pred_check_branch
        %130 = sbr.rel (%p128) target = $region28
      $region27: #{seg_v5_block_innermost.2} parent=23 // pred_region
        %p131 = scmp.lt.s32.totalorder %s9, 1
        %s132 = scalar_select %p131, %s9, 1
        %s133 = smul.addr %s132, 16
        %s134 = smul.addr %s133, 8
        %s135 = scalar_lea.vmem %s0, %s134
      $region28: #{seg_v5_block_innermost.2} parent=23 // pred_fallthru
        _
    $region24: #{seg_v5_block_innermost.2} parent=5 // pred_fallthru
      _
    %p136 = scmp.le.s32.totalorder 1, %s9
    %p137 = scmp.lt.s32.totalorder %s9, 3
    %p138 = pnand %p136, %p137
    %p139 = pneg %p138
    // Predicated region
    $region29: #{seg_v5_block_innermost.2} parent=5 // pred_check
      _
    $region30: #{seg_v5_block_innermost.2} parent=5 // pred_check_branch
      %141 = sbr.rel (%p138) target = $region32
    $region31: #{seg_v5_block_innermost.2} parent=5 // pred_region
      %s142 = ssub.s32 %s9, 1
      %p143 = scmp.lt.s32.totalorder %s14, 1
      %s144 = scalar_select %p143, %s14, 1
      %s145 = smul.addr %s144, 16
      %s146 = smul.addr %s145, 8
      %s147 = scalar_lea.vmem %s0, %s146
      %p148 = pneg %p35
      %p149 = pneg %p32
      %p150 = pneg %p56
      %p151 = pneg %p53
      %p152 = pneg %p77
      %p153 = pneg %p74
      %p154 = pneg %p103
      %p155 = pneg %p100
      %p156 = scmp.lt.s32.totalorder %s14, 1
      %s157 = scalar_select %p156, %s14, 1
      %s158 = smul.addr %s157, 2
      %s159 = scalar_lea.vmem %s3, %s158
      %p160 = scmp.lt.s32.totalorder %s14, 1
      %s161 = scalar_select %p160, %s14, 1
      %s162 = smul.addr %s161, 16
      %s163 = smul.addr %s162, 8
      %s164 = scalar_lea.vmem %s0, %s163
      %p165 = scmp.lt.s32.totalorder %s14, 1
      %s166 = scalar_select %p165, %s14, 1
      %s167 = smul.addr %s166, 2
      %s168 = scalar_lea.vmem %s3, %s167
      %v170 = vld [vmem:[%s164] sm:$0xff]
      %v171 = vld [vmem:[%s164 + $0x8] sm:$0xff]
      %v172 = vld [vmem:[%s164 + $0x10] sm:$0xff]
      %v173 = vld [vmem:[%s164 + $0x18] sm:$0xff]
      %v174 = vld [vmem:[%s164 + $0x20] sm:$0xff]
      %v175 = vld [vmem:[%s164 + $0x28] sm:$0xff]
      %v176 = vld [vmem:[%s164 + $0x30] sm:$0xff]
      %v177 = vld [vmem:[%s164 + $0x38] sm:$0xff]
      %v178 = vld [vmem:[%s164 + $0x40] sm:$0xff]
      %v179 = vld [vmem:[%s164 + $0x48] sm:$0xff]
      %v180 = vld [vmem:[%s164 + $0x50] sm:$0xff]
      %v181 = vld [vmem:[%s164 + $0x58] sm:$0xff]
      %v182 = vld [vmem:[%s164 + $0x60] sm:$0xff]
      %v183 = vld [vmem:[%s164 + $0x68] sm:$0xff]
      %v184 = vld [vmem:[%s164 + $0x70] sm:$0xff]
      %v185 = vld [vmem:[%s164 + $0x78] sm:$0xff]
      %v186 = vmax.f32 %v170, 0.0
      %v187 = vmax.f32 %v172, 0.0
      %v188 = vmax.f32 %v174, 0.0
      %v189 = vmax.f32 %v176, 0.0
      %v190 = vmax.f32 %v178, 0.0
      %v191 = vmax.f32 %v180, 0.0
      %v192 = vmax.f32 %v182, 0.0
      %v193 = vmax.f32 %v184, 0.0
      %v194 = vmax.f32 %v171, 0.0
      %v195 = vmax.f32 %v173, 0.0
      %v196 = vmax.f32 %v175, 0.0
      %v197 = vmax.f32 %v177, 0.0
      %v198 = vmax.f32 %v179, 0.0
      %v199 = vmax.f32 %v181, 0.0
      %v200 = vmax.f32 %v183, 0.0
      %v201 = vmax.f32 %v185, 0.0
      %v210 = vrot.slane %v194, 7
      %v211 = vrot.slane %v195, 7
      %v212 = vrot.slane %v196, 7
      %v213 = vrot.slane %v197, 7
      %v214 = vrot.slane %v198, 7
      %v215 = vrot.slane %v199, 7
      %v216 = vrot.slane %v200, 7
      %v217 = vrot.slane %v201, 7
      %218 = vrot.lane.b32.xlu0 %v210, 124
      %v219 = vpop.permute.xlu0 %218
      %220 = vrot.lane.b32.xlu0 %v211, 124
      %v221 = vpop.permute.xlu0 %220
      %222 = vrot.lane.b32.xlu0 %v212, 124
      %v223 = vpop.permute.xlu0 %222
      %224 = vrot.lane.b32.xlu0 %v213, 124
      %v225 = vpop.permute.xlu0 %224
      %226 = vrot.lane.b32.xlu0 %v214, 124
      %v227 = vpop.permute.xlu0 %226
      %228 = vrot.lane.b32.xlu0 %v215, 124
      %v229 = vpop.permute.xlu0 %228
      %230 = vrot.lane.b32.xlu0 %v216, 124
      %v231 = vpop.permute.xlu0 %230
      %232 = vrot.lane.b32.xlu0 %v217, 124
      %v233 = vpop.permute.xlu0 %232
      %vm242 = vcmask 1040384
      %v243 = vsel %vm242, 0.0, %v219
      %v244 = vsel %vm242, 0.0, %v221
      %v245 = vsel %vm242, 0.0, %v223
      %v246 = vsel %vm242, 0.0, %v225
      %v247 = vsel %vm242, 0.0, %v227
      %v248 = vsel %vm242, 0.0, %v229
      %v249 = vsel %vm242, 0.0, %v231
      %v250 = vsel %vm242, 0.0, %v233
      %251 = vrot.lane.b32.xlu0 %v194, 124
      %v252 = vpop.permute.xlu0 %251
      %253 = vrot.lane.b32.xlu0 %v195, 124
      %v254 = vpop.permute.xlu0 %253
      %255 = vrot.lane.b32.xlu0 %v196, 124
      %v256 = vpop.permute.xlu0 %255
      %257 = vrot.lane.b32.xlu0 %v197, 124
      %v258 = vpop.permute.xlu0 %257
      %259 = vrot.lane.b32.xlu0 %v198, 124
      %v260 = vpop.permute.xlu0 %259
      %261 = vrot.lane.b32.xlu0 %v199, 124
      %v262 = vpop.permute.xlu0 %261
      %263 = vrot.lane.b32.xlu0 %v200, 124
      %v264 = vpop.permute.xlu0 %263
      %v273 = vrot.slane %v186, 7
      %v274 = vrot.slane %v187, 7
      %v275 = vrot.slane %v188, 7
      %v276 = vrot.slane %v189, 7
      %v277 = vrot.slane %v190, 7
      %v278 = vrot.slane %v191, 7
      %v279 = vrot.slane %v192, 7
      %v280 = vrot.slane %v193, 7
      %281 = vrot.lane.b32.xlu0 %v273, 124
      %v282 = vpop.permute.xlu0 %281
      %283 = vrot.lane.b32.xlu0 %v274, 124
      %v284 = vpop.permute.xlu0 %283
      %285 = vrot.lane.b32.xlu0 %v275, 124
      %v286 = vpop.permute.xlu0 %285
      %287 = vrot.lane.b32.xlu0 %v276, 124
      %v288 = vpop.permute.xlu0 %287
      %289 = vrot.lane.b32.xlu0 %v277, 124
      %v290 = vpop.permute.xlu0 %289
      %291 = vrot.lane.b32.xlu0 %v278, 124
      %v292 = vpop.permute.xlu0 %291
      %293 = vrot.lane.b32.xlu0 %v279, 124
      %v294 = vpop.permute.xlu0 %293
      %295 = vrot.lane.b32.xlu0 %v280, 124
      %v296 = vpop.permute.xlu0 %295
      %v305 = vsel %vm242, 0.0, %v282
      %v306 = vsel %vm242, 0.0, %v284
      %v307 = vsel %vm242, 0.0, %v286
      %v308 = vsel %vm242, 0.0, %v288
      %v309 = vsel %vm242, 0.0, %v290
      %v310 = vsel %vm242, 0.0, %v292
      %v311 = vsel %vm242, 0.0, %v294
      %v312 = vsel %vm242, 0.0, %v296
      %314 = vrot.lane.b32.xlu0 0.0, 4
      %v315 = vpop.permute.xlu0 %314
      %316 = vrot.lane.b32.xlu0 %v194, 4
      %v317 = vpop.permute.xlu0 %316
      %318 = vrot.lane.b32.xlu0 %v195, 4
      %v319 = vpop.permute.xlu0 %318
      %320 = vrot.lane.b32.xlu0 %v196, 4
      %v321 = vpop.permute.xlu0 %320
      %322 = vrot.lane.b32.xlu0 %v197, 4
      %v323 = vpop.permute.xlu0 %322
      %324 = vrot.lane.b32.xlu0 %v198, 4
      %v325 = vpop.permute.xlu0 %324
      %326 = vrot.lane.b32.xlu0 %v199, 4
      %v327 = vpop.permute.xlu0 %326
      %328 = vrot.lane.b32.xlu0 %v200, 4
      %v329 = vpop.permute.xlu0 %328
      %338 = vrot.lane.b32.xlu0 0.0, 8
      %v339 = vpop.permute.xlu0 %338
      %340 = vrot.lane.b32.xlu0 %v252, 8
      %v341 = vpop.permute.xlu0 %340
      %342 = vrot.lane.b32.xlu0 %v254, 8
      %v343 = vpop.permute.xlu0 %342
      %344 = vrot.lane.b32.xlu0 %v256, 8
      %v345 = vpop.permute.xlu0 %344
      %346 = vrot.lane.b32.xlu0 %v258, 8
      %v347 = vpop.permute.xlu0 %346
      %348 = vrot.lane.b32.xlu0 %v260, 8
      %v349 = vpop.permute.xlu0 %348
      %350 = vrot.lane.b32.xlu0 %v262, 8
      %v351 = vpop.permute.xlu0 %350
      %352 = vrot.lane.b32.xlu0 %v264, 8
      %v353 = vpop.permute.xlu0 %352
      %370 = vrot.lane.b32.xlu0 %v305, 12
      %v371 = vpop.permute.xlu0 %370
      %372 = vrot.lane.b32.xlu0 %v306, 12
      %v373 = vpop.permute.xlu0 %372
      %374 = vrot.lane.b32.xlu0 %v307, 12
      %v375 = vpop.permute.xlu0 %374
      %376 = vrot.lane.b32.xlu0 %v308, 12
      %v377 = vpop.permute.xlu0 %376
      %378 = vrot.lane.b32.xlu0 %v309, 12
      %v379 = vpop.permute.xlu0 %378
      %380 = vrot.lane.b32.xlu0 %v310, 12
      %v381 = vpop.permute.xlu0 %380
      %382 = vrot.lane.b32.xlu0 %v311, 12
      %v383 = vpop.permute.xlu0 %382
      %384 = vrot.lane.b32.xlu0 %v312, 12
      %v385 = vpop.permute.xlu0 %384
      %394 = vrot.lane.b32.xlu0 %v186, 16
      %v395 = vpop.permute.xlu0 %394
      %396 = vrot.lane.b32.xlu0 %v187, 16
      %v397 = vpop.permute.xlu0 %396
      %398 = vrot.lane.b32.xlu0 %v188, 16
      %v399 = vpop.permute.xlu0 %398
      %400 = vrot.lane.b32.xlu0 %v189, 16
      %v401 = vpop.permute.xlu0 %400
      %402 = vrot.lane.b32.xlu0 %v190, 16
      %v403 = vpop.permute.xlu0 %402
      %404 = vrot.lane.b32.xlu0 %v191, 16
      %v405 = vpop.permute.xlu0 %404
      %406 = vrot.lane.b32.xlu0 %v192, 16
      %v407 = vpop.permute.xlu0 %406
      %408 = vrot.lane.b32.xlu0 %v193, 16
      %v409 = vpop.permute.xlu0 %408
      %426 = vrot.lane.b32.xlu0 %v243, 24
      %v427 = vpop.permute.xlu0 %426
      %428 = vrot.lane.b32.xlu0 %v244, 24
      %v429 = vpop.permute.xlu0 %428
      %430 = vrot.lane.b32.xlu0 %v245, 24
      %v431 = vpop.permute.xlu0 %430
      %432 = vrot.lane.b32.xlu0 %v246, 24
      %v433 = vpop.permute.xlu0 %432
      %434 = vrot.lane.b32.xlu0 %v247, 24
      %v435 = vpop.permute.xlu0 %434
      %436 = vrot.lane.b32.xlu0 %v248, 24
      %v437 = vpop.permute.xlu0 %436
      %438 = vrot.lane.b32.xlu0 %v249, 24
      %v439 = vpop.permute.xlu0 %438
      %440 = vrot.lane.b32.xlu0 %v250, 24
      %v441 = vpop.permute.xlu0 %440
      %450 = vrot.lane.b32.xlu0 %v194, 28
      %v451 = vpop.permute.xlu0 %450
      %452 = vrot.lane.b32.xlu0 %v195, 28
      %v453 = vpop.permute.xlu0 %452
      %454 = vrot.lane.b32.xlu0 %v196, 28
      %v455 = vpop.permute.xlu0 %454
      %456 = vrot.lane.b32.xlu0 %v197, 28
      %v457 = vpop.permute.xlu0 %456
      %458 = vrot.lane.b32.xlu0 %v198, 28
      %v459 = vpop.permute.xlu0 %458
      %460 = vrot.lane.b32.xlu0 %v199, 28
      %v461 = vpop.permute.xlu0 %460
      %462 = vrot.lane.b32.xlu0 %v200, 28
      %v463 = vpop.permute.xlu0 %462
      %464 = vrot.lane.b32.xlu0 %v201, 28
      %v465 = vpop.permute.xlu0 %464
      %vm474 = vcmask 31744
      %v475 = vsel %vm474, 0.0, %v315
      %v476 = vsel %vm474, %v243, %v317
      %v477 = vsel %vm474, %v244, %v319
      %v478 = vsel %vm474, %v245, %v321
      %v479 = vsel %vm474, %v246, %v323
      %v480 = vsel %vm474, %v247, %v325
      %v481 = vsel %vm474, %v248, %v327
      %v482 = vsel %vm474, %v249, %v329
      %vm483 = vcmask 64512
      %v484 = vsel %vm483, %v475, %v339
      %v485 = vsel %vm483, %v476, %v341
      %v486 = vsel %vm483, %v477, %v343
      %v487 = vsel %vm483, %v478, %v345
      %v488 = vsel %vm483, %v479, %v347
      %v489 = vsel %vm483, %v480, %v349
      %v490 = vsel %vm483, %v481, %v351
      %v491 = vsel %vm483, %v482, %v353
      %vm492 = vcmask 97280
      %v493 = vsel %vm492, %v484, %v371
      %v494 = vsel %vm492, %v485, %v373
      %v495 = vsel %vm492, %v486, %v375
      %v496 = vsel %vm492, %v487, %v377
      %v497 = vsel %vm492, %v488, %v379
      %v498 = vsel %vm492, %v489, %v381
      %v499 = vsel %vm492, %v490, %v383
      %v500 = vsel %vm492, %v491, %v385
      %vm501 = vcmask 130048
      %v502 = vsel %vm501, %v493, %v395
      %v503 = vsel %vm501, %v494, %v397
      %v504 = vsel %vm501, %v495, %v399
      %v505 = vsel %vm501, %v496, %v401
      %v506 = vsel %vm501, %v497, %v403
      %v507 = vsel %vm501, %v498, %v405
      %v508 = vsel %vm501, %v499, %v407
      %v509 = vsel %vm501, %v500, %v409
      %vm510 = vcmask 162816
      %v511 = vsel %vm510, %v502, %v395
      %v512 = vsel %vm510, %v503, %v397
      %v513 = vsel %vm510, %v504, %v399
      %v514 = vsel %vm510, %v505, %v401
      %v515 = vsel %vm510, %v506, %v403
      %v516 = vsel %vm510, %v507, %v405
      %v517 = vsel %vm510, %v508, %v407
      %v518 = vsel %vm510, %v509, %v409
      %vm519 = vcmask 195584
      %v520 = vsel %vm519, %v511, %v427
      %v521 = vsel %vm519, %v512, %v429
      %v522 = vsel %vm519, %v513, %v431
      %v523 = vsel %vm519, %v514, %v433
      %v524 = vsel %vm519, %v515, %v435
      %v525 = vsel %vm519, %v516, %v437
      %v526 = vsel %vm519, %v517, %v439
      %v527 = vsel %vm519, %v518, %v441
      %vm528 = vcmask 228352
      %v529 = vsel %vm528, %v520, %v451
      %v530 = vsel %vm528, %v521, %v453
      %v531 = vsel %vm528, %v522, %v455
      %v532 = vsel %vm528, %v523, %v457
      %v533 = vsel %vm528, %v524, %v459
      %v534 = vsel %vm528, %v525, %v461
      %v535 = vsel %vm528, %v526, %v463
      %v536 = vsel %vm528, %v527, %v465
      %vm537 = vcmask 261120
      %v538 = vsel %vm537, %v529, %v451
      %v539 = vsel %vm537, %v530, %v453
      %v540 = vsel %vm537, %v531, %v455
      %v541 = vsel %vm537, %v532, %v457
      %v542 = vsel %vm537, %v533, %v459
      %v543 = vsel %vm537, %v534, %v461
      %v544 = vsel %vm537, %v535, %v463
      %v545 = vsel %vm537, %v536, %v465
      %v546 = vpack.c.bf16 %v539, %v538
      %v547 = vpack.c.bf16 %v541, %v540
      %v548 = vpack.c.bf16 %v543, %v542
      %v549 = vpack.c.bf16 %v545, %v544
      %v550 = vld [vmem:[%s1] sm:$0xf]
      %v551 = vld [vmem:[%s1 + $0x4] sm:$0xf]
      %v552 = vld [vmem:[%s1 + $0x8] sm:$0xf]
      %v553 = vld [vmem:[%s1 + $0xc] sm:$0xf]
      %v554 = vld [vmem:[%s1 + $0x10] sm:$0x3]
      %v560 = vunpack.c.l.b16 %v550
      %v561 = vunpack.c.l.b16 %v551
      %v562 = vunpack.c.l.b16 %v552
      %v563 = vunpack.c.l.b16 %v553
      %v564 = vunpack.c.l.b16 %v554
      %v565 = vpack.c.b16 %v561, %v560
      %v566 = vpack.c.b16 %v563, %v562
      %v567 = vpack.c.b16 %v564, %v564
      %vm570 = vcmask 293888
      %v572 = vsel %vm570, %v546, 0
      %v575 = vsel %vm570, %v547, 0
      %v578 = vsel %vm570, %v548, 0
      %v581 = vsel %vm570, %v549, 0
      %vm583 = vcmask 1041408
      %v585 = vsel %vm583, %v567, 0
      %587 = vmatprep.subr.bf16.mxu0 0
      %588 = vmatpush1.bf16.msra.mxu0 0
      %589 = vmatprep.subr.bf16.mxu0 0
      %590 = vmatpush1.bf16.msra.mxu0 0
      %591 = vmatprep.subr.bf16.mxu0 0
      %592 = vmatpush1.bf16.msra.mxu0 0
      %593 = vmatprep.subr.bf16.mxu0 0
      %594 = vmatpush1.bf16.msra.mxu0 0
      %595 = vmatprep.subr.bf16.mxu0 0
      %596 = vmatpush1.bf16.msra.mxu0 0
      %597 = vmatprep.subr.bf16.mxu0 0
      %598 = vmatpush1.bf16.msra.mxu0 %v585
      %599 = vmatprep.subr.bf16.mxu0 0
      %600 = vmatpush1.bf16.msra.mxu0 %v566
      %601 = vmatprep.subr.bf16.mxu0 0
      %602 = vmatpush1.bf16.msra.mxu0 %v565
      %603 = vmatprep.subr.bf16.mxu0 0
      %604 = vmatpush2.bf16.msra.mxu0 0
      %605 = vmatprep.subr.bf16.mxu0 0
      %606 = vmatpush2.bf16.msra.mxu0 0
      %607 = vmatprep.subr.bf16.mxu0 0
      %608 = vmatpush2.bf16.msra.mxu0 0
      %609 = vmatprep.subr.bf16.mxu0 0
      %610 = vmatpush2.bf16.msra.mxu0 0
      %611 = vmatprep.subr.bf16.mxu0 0
      %612 = vmatpush2.bf16.msra.mxu0 0
      %613 = vmatprep.subr.bf16.mxu0 0
      %614 = vmatpush2.bf16.msra.mxu0 0
      %615 = vmatprep.subr.bf16.mxu0 0
      %616 = vmatpush2.bf16.msra.mxu0 0
      %617 = vmatprep.subr.bf16.mxu0 0
      %618 = vmatpush2.bf16.msra.mxu0 0
      %619 = vmatprep.mubr.bf16.mxu0 0
      %620 = vmatmul.mubr.bf16.gmra.mxu0 %v572
      %v621 = vpop.f32.mrf.mxu0
      %v622 = vadd.f32 0.0, %v621
      %v623 = vpop.f32.mrf.mxu0
      %v624 = vpop.f32.mrf.mxu0
      %v625 = vadd.f32 0.0, %v624
      %v626 = vpop.f32.mrf.mxu0
      %627 = vmatprep.mubr.bf16.mxu0 0
      %628 = vmatmul.mubr.bf16.gmra.mxu0 %v575
      %v629 = vpop.f32.mrf.mxu0
      %v630 = vadd.f32 0.0, %v629
      %v631 = vpop.f32.mrf.mxu0
      %v632 = vpop.f32.mrf.mxu0
      %v633 = vadd.f32 0.0, %v632
      %v634 = vpop.f32.mrf.mxu0
      %635 = vmatprep.mubr.bf16.mxu0 0
      %636 = vmatmul.mubr.bf16.gmra.mxu0 %v578
      %v637 = vpop.f32.mrf.mxu0
      %v638 = vadd.f32 0.0, %v637
      %v639 = vpop.f32.mrf.mxu0
      %v640 = vpop.f32.mrf.mxu0
      %v641 = vadd.f32 0.0, %v640
      %v642 = vpop.f32.mrf.mxu0
      %643 = vmatprep.mubr.bf16.mxu0 0
      %644 = vmatmul.mubr.bf16.gmra.mxu0 %v581
      %v645 = vpop.f32.mrf.mxu0
      %v646 = vadd.f32 0.0, %v645
      %v647 = vpop.f32.mrf.mxu0
      %v648 = vpop.f32.mrf.mxu0
      %v649 = vadd.f32 0.0, %v648
      %v650 = vpop.f32.mrf.mxu0
      %651 = vdwg.mxu0
      %v652 = vmax.f32 %v622, 0.0
      %v653 = vmax.f32 %v625, 0.0
      %v654 = vmax.f32 %v630, 0.0
      %v655 = vmax.f32 %v633, 0.0
      %v656 = vmax.f32 %v638, 0.0
      %v657 = vmax.f32 %v641, 0.0
      %v658 = vmax.f32 %v646, 0.0
      %v659 = vmax.f32 %v649, 0.0
      %v668 = vrot.slane %v652, 1
      %v669 = vrot.slane %v653, 1
      %v670 = vrot.slane %v654, 1
      %v671 = vrot.slane %v655, 1
      %v672 = vrot.slane %v656, 1
      %v673 = vrot.slane %v657, 1
      %v674 = vrot.slane %v658, 1
      %v675 = vrot.slane %v659, 1
      %vm684 = vcmask 1046528
      %v685 = vsel %vm684, %v668, 0.0
      %v686 = vsel %vm684, %v669, 0.0
      %v687 = vsel %vm684, %v670, 0.0
      %v688 = vsel %vm684, %v671, 0.0
      %v689 = vsel %vm684, %v672, 0.0
      %v690 = vsel %vm684, %v673, 0.0
      %v691 = vsel %vm684, %v674, 0.0
      %v692 = vsel %vm684, %v675, 0.0
      %701 = vrot.lane.b32.xlu0 %v685, 8
      %v702 = vpop.permute.xlu0 %701
      %703 = vrot.lane.b32.xlu0 %v686, 8
      %v704 = vpop.permute.xlu0 %703
      %705 = vrot.lane.b32.xlu0 %v687, 8
      %v706 = vpop.permute.xlu0 %705
      %707 = vrot.lane.b32.xlu0 %v688, 8
      %v708 = vpop.permute.xlu0 %707
      %709 = vrot.lane.b32.xlu0 %v689, 8
      %v710 = vpop.permute.xlu0 %709
      %711 = vrot.lane.b32.xlu0 %v690, 8
      %v712 = vpop.permute.xlu0 %711
      %713 = vrot.lane.b32.xlu0 %v691, 8
      %v714 = vpop.permute.xlu0 %713
      %715 = vrot.lane.b32.xlu0 %v692, 8
      %v716 = vpop.permute.xlu0 %715
      %725 = vrot.lane.b32.xlu0 %v653, 16
      %v726 = vpop.permute.xlu0 %725
      %727 = vrot.lane.b32.xlu0 %v654, 16
      %v728 = vpop.permute.xlu0 %727
      %729 = vrot.lane.b32.xlu0 %v655, 16
      %v730 = vpop.permute.xlu0 %729
      %731 = vrot.lane.b32.xlu0 %v656, 16
      %v732 = vpop.permute.xlu0 %731
      %733 = vrot.lane.b32.xlu0 %v657, 16
      %v734 = vpop.permute.xlu0 %733
      %735 = vrot.lane.b32.xlu0 %v658, 16
      %v736 = vpop.permute.xlu0 %735
      %737 = vrot.lane.b32.xlu0 %v659, 16
      %v738 = vpop.permute.xlu0 %737
      %739 = vrot.lane.b32.xlu0 0.0, 16
      %v740 = vpop.permute.xlu0 %739
      %749 = vrot.lane.b32.xlu0 %v686, 24
      %v750 = vpop.permute.xlu0 %749
      %751 = vrot.lane.b32.xlu0 %v687, 24
      %v752 = vpop.permute.xlu0 %751
      %753 = vrot.lane.b32.xlu0 %v688, 24
      %v754 = vpop.permute.xlu0 %753
      %755 = vrot.lane.b32.xlu0 %v689, 24
      %v756 = vpop.permute.xlu0 %755
      %757 = vrot.lane.b32.xlu0 %v690, 24
      %v758 = vpop.permute.xlu0 %757
      %759 = vrot.lane.b32.xlu0 %v691, 24
      %v760 = vpop.permute.xlu0 %759
      %761 = vrot.lane.b32.xlu0 %v692, 24
      %v762 = vpop.permute.xlu0 %761
      %763 = vrot.lane.b32.xlu0 0.0, 24
      %v764 = vpop.permute.xlu0 %763
      %v773 = vsel %vm483, %v652, %v702
      %v774 = vsel %vm483, %v653, %v704
      %v775 = vsel %vm483, %v654, %v706
      %v776 = vsel %vm483, %v655, %v708
      %v777 = vsel %vm483, %v656, %v710
      %v778 = vsel %vm483, %v657, %v712
      %v779 = vsel %vm483, %v658, %v714
      %v780 = vsel %vm483, %v659, %v716
      %v781 = vsel %vm501, %v773, %v726
      %v782 = vsel %vm501, %v774, %v728
      %v783 = vsel %vm501, %v775, %v730
      %v784 = vsel %vm501, %v776, %v732
      %v785 = vsel %vm501, %v777, %v734
      %v786 = vsel %vm501, %v778, %v736
      %v787 = vsel %vm501, %v779, %v738
      %v788 = vsel %vm501, %v780, %v740
      %v789 = vsel %vm519, %v781, %v750
      %v790 = vsel %vm519, %v782, %v752
      %v791 = vsel %vm519, %v783, %v754
      %v792 = vsel %vm519, %v784, %v756
      %v793 = vsel %vm519, %v785, %v758
      %v794 = vsel %vm519, %v786, %v760
      %v795 = vsel %vm519, %v787, %v762
      %v796 = vsel %vm519, %v788, %v764
      %v797 = vpack.c.bf16 %v790, %v789
      %v798 = vpack.c.bf16 %v792, %v791
      %v799 = vpack.c.bf16 %v794, %v793
      %v800 = vpack.c.bf16 %v796, %v795
      %v801 = vld [vmem:[%s2] sm:$0xf]
      %v802 = vld [vmem:[%s2 + $0x4] sm:$0xf]
      %v803 = vld [vmem:[%s2 + $0x8] sm:$0xf]
      %v804 = vld [vmem:[%s2 + $0xc] sm:$0xf]
      %v809 = vunpack.c.l.b16 %v801
      %v810 = vunpack.c.l.b16 %v802
      %v811 = vunpack.c.l.b16 %v803
      %v812 = vunpack.c.l.b16 %v804
      %v813 = vpack.c.b16 %v810, %v809
      %v814 = vpack.c.b16 %v812, %v811
      %v818 = vsel %vm537, %v797, 0
      %v821 = vsel %vm537, %v798, 0
      %v824 = vsel %vm537, %v799, 0
      %v827 = vsel %vm537, %v800, 0
      %829 = vmatprep.subr.bf16.mxu0 0
      %830 = vmatpush1.bf16.msra.mxu0 0
      %831 = vmatprep.subr.bf16.mxu0 0
      %832 = vmatpush1.bf16.msra.mxu0 0
      %833 = vmatprep.subr.bf16.mxu0 0
      %834 = vmatpush1.bf16.msra.mxu0 0
      %835 = vmatprep.subr.bf16.mxu0 0
      %836 = vmatpush1.bf16.msra.mxu0 0
      %837 = vmatprep.subr.bf16.mxu0 0
      %838 = vmatpush1.bf16.msra.mxu0 0
      %839 = vmatprep.subr.bf16.mxu0 0
      %840 = vmatpush1.bf16.msra.mxu0 0
      %841 = vmatprep.subr.bf16.mxu0 0
      %842 = vmatpush1.bf16.msra.mxu0 %v814
      %843 = vmatprep.subr.bf16.mxu0 0
      %844 = vmatpush1.bf16.msra.mxu0 %v813
      %845 = vmatprep.subr.bf16.mxu0 0
      %846 = vmatpush2.bf16.msra.mxu0 0
      %847 = vmatprep.subr.bf16.mxu0 0
      %848 = vmatpush2.bf16.msra.mxu0 0
      %849 = vmatprep.subr.bf16.mxu0 0
      %850 = vmatpush2.bf16.msra.mxu0 0
      %851 = vmatprep.subr.bf16.mxu0 0
      %852 = vmatpush2.bf16.msra.mxu0 0
      %853 = vmatprep.subr.bf16.mxu0 0
      %854 = vmatpush2.bf16.msra.mxu0 0
      %855 = vmatprep.subr.bf16.mxu0 0
      %856 = vmatpush2.bf16.msra.mxu0 0
      %857 = vmatprep.subr.bf16.mxu0 0
      %858 = vmatpush2.bf16.msra.mxu0 0
      %859 = vmatprep.subr.bf16.mxu0 0
      %860 = vmatpush2.bf16.msra.mxu0 0
      %861 = vmatprep.mubr.bf16.mxu0 0
      %862 = vmatmul.mubr.bf16.gmra.mxu0 %v818
      %v863 = vpop.f32.mrf.mxu0
      %v864 = vadd.f32 0.0, %v863
      %v865 = vpop.f32.mrf.mxu0
      %v866 = vpop.f32.mrf.mxu0
      %v867 = vadd.f32 0.0, %v866
      %v868 = vpop.f32.mrf.mxu0
      %869 = vmatprep.mubr.bf16.mxu0 0
      %870 = vmatmul.mubr.bf16.gmra.mxu0 %v821
      %v871 = vpop.f32.mrf.mxu0
      %v872 = vadd.f32 0.0, %v871
      %v873 = vpop.f32.mrf.mxu0
      %v874 = vpop.f32.mrf.mxu0
      %v875 = vadd.f32 0.0, %v874
      %v876 = vpop.f32.mrf.mxu0
      %877 = vmatprep.mubr.bf16.mxu0 0
      %878 = vmatmul.mubr.bf16.gmra.mxu0 %v824
      %v879 = vpop.f32.mrf.mxu0
      %v880 = vadd.f32 0.0, %v879
      %v881 = vpop.f32.mrf.mxu0
      %v882 = vpop.f32.mrf.mxu0
      %v883 = vadd.f32 0.0, %v882
      %v884 = vpop.f32.mrf.mxu0
      %885 = vmatprep.mubr.bf16.mxu0 0
      %886 = vmatmul.mubr.bf16.gmra.mxu0 %v827
      %v887 = vpop.f32.mrf.mxu0
      %v888 = vadd.f32 0.0, %v887
      %v889 = vpop.f32.mrf.mxu0
      %v890 = vpop.f32.mrf.mxu0
      %v891 = vadd.f32 0.0, %v890
      %v892 = vpop.f32.mrf.mxu0
      %893 = vdwg.mxu0
      %v894 = vsel %vm501, %v864, 0.0
      %v895 = vsel %vm501, %v867, 0.0
      %v896 = vadd.f32 %v894, %v895
      %v897 = vsel %vm501, %v872, 0.0
      %v898 = vadd.f32 %v896, %v897
      %v899 = vsel %vm501, %v875, 0.0
      %v900 = vadd.f32 %v898, %v899
      %v901 = vsel %vm501, %v880, 0.0
      %v902 = vadd.f32 %v900, %v901
      %v903 = vsel %vm501, %v883, 0.0
      %v904 = vadd.f32 %v902, %v903
      %v905 = vsel %vm501, %v888, 0.0
      %v906 = vadd.f32 %v904, %v905
      %v907 = vsel %vm501, %v891, 0.0
      %v908 = vadd.f32 %v906, %v907
      %v909 = vrot.slane %v908, 4
      %v910 = vadd.f32 %v908, %v909
      %v911 = vrot.slane %v910, 2
      %v912 = vadd.f32 %v910, %v911
      %v913 = vrot.slane %v912, 1
      %v914 = vadd.f32 %v912, %v913
      %v915 = vmul.f32 %v914, 0.015625
      %v916 = vsub.f32 %v864, %v915
      %v917 = vsub.f32 %v867, %v915
      %v918 = vsub.f32 %v872, %v915
      %v919 = vsub.f32 %v875, %v915
      %v920 = vsub.f32 %v880, %v915
      %v921 = vsub.f32 %v883, %v915
      %v922 = vsub.f32 %v888, %v915
      %v923 = vsub.f32 %v891, %v915
      %v924 = vmul.f32 %v916, %v916
      %v925 = vmul.f32 %v917, %v917
      %v926 = vmul.f32 %v918, %v918
      %v927 = vmul.f32 %v919, %v919
      %v928 = vmul.f32 %v920, %v920
      %v929 = vmul.f32 %v921, %v921
      %v930 = vmul.f32 %v922, %v922
      %v931 = vmul.f32 %v923, %v923
      %v932 = vsel %vm501, %v924, 0.0
      %v933 = vsel %vm501, %v925, 0.0
      %v934 = vadd.f32 %v932, %v933
      %v935 = vsel %vm501, %v926, 0.0
      %v936 = vadd.f32 %v934, %v935
      %v937 = vsel %vm501, %v927, 0.0
      %v938 = vadd.f32 %v936, %v937
      %v939 = vsel %vm501, %v928, 0.0
      %v940 = vadd.f32 %v938, %v939
      %v941 = vsel %vm501, %v929, 0.0
      %v942 = vadd.f32 %v940, %v941
      %v943 = vsel %vm501, %v930, 0.0
      %v944 = vadd.f32 %v942, %v943
      %v945 = vsel %vm501, %v931, 0.0
      %v946 = vadd.f32 %v944, %v945
      %v947 = vrot.slane %v946, 4
      %v948 = vadd.f32 %v946, %v947
      %v949 = vrot.slane %v948, 2
      %v950 = vadd.f32 %v948, %v949
      %v951 = vrot.slane %v950, 1
      %v952 = vadd.f32 %v950, %v951
      %vm953 = vcmask 122880
      %954 = vst.msk [vmem:[%s168] sm:$0x1] %vm953, %v914
      %955 = vst.msk [vmem:[%s168 + $0x1] sm:$0x1] %vm953, %v952
      %p956 = scmp.lt.s32.totalorder %s14, 1
      %s957 = scalar_select %p956, %s14, 1
      %s958 = smul.addr %s957, 2
      %s959 = scalar_lea.vmem %s3, %s958
      // Predicated region
      $region33: #{seg_v5_block_innermost.2} parent=31 // pred_check
        %p960 = pneg %p100
      $region34: #{seg_v5_block_innermost.2} parent=31 // pred_check_branch
        %962 = sbr.rel (%p960) target = $region36
      $region35: #{seg_v5_block_innermost.2} parent=31 // pred_region
        _
      $region36: #{seg_v5_block_innermost.2} parent=31 // pred_fallthru
        _
    $region32: #{seg_v5_block_innermost.2} parent=5 // pred_fallthru
      _
    %p963 = scmp.le.s32.totalorder 2, %s9
    // Predicated region
    $region37: #{seg_v5_block_innermost.2} parent=5 // pred_check
      %p964 = pneg %p963
    $region38: #{seg_v5_block_innermost.2} parent=5 // pred_check_branch
      %966 = sbr.rel (%p964) target = $region40
    $region39: #{seg_v5_block_innermost.2} parent=5 // pred_region
      %s967 = ssub.s32 %s9, 2
      // Predicated region
      $region41: #{seg_v5_block_innermost.2} parent=39 // pred_check
        %p968 = pneg %p106
      $region42: #{seg_v5_block_innermost.2} parent=39 // pred_check_branch
        %970 = sbr.rel (%p968) target = $region44
      $region43: #{seg_v5_block_innermost.2} parent=39 // pred_region
        %p971 = scmp.lt.s32.totalorder %s15, 1
        %s972 = scalar_select %p971, %s15, 1
        %s973 = smul.addr %s972, 2
        %s974 = scalar_lea.vmem %s3, %s973
      $region44: #{seg_v5_block_innermost.2} parent=39 // pred_fallthru
        _
    $region40: #{seg_v5_block_innermost.2} parent=5 // pred_fallthru
      _
  $region6: #{seg_v5_block_innermost.2} parent=0 // loop_footer
    %s13 = sadd.s32 1, %s9
  $region7: #{seg_v5_block_innermost.2} parent=0 // loop_footer_branch
    %8 = sbr.rel target = $region3
  $region8: #{seg_v5_block_innermost.2} parent=0 // loop_exit
    _

// kernel: seg_v5_block_innermost.3
$region0: #{seg_v5_block_innermost.3}
  #allocation0 [shape = 'u32[]', space=smem, size = 0x4, offset = 0x4, fixed_abs, tag = 'smem constant byte address 0x4 - core index']
  #allocation1 [shape = 'u32[144,128]{1,0:T(1,128)}', space=vmem, size = 0x12000, scoped, tag = 'internal scratch']
  %s0 = inlined_call_operand.vmem [shape: f32[2,8,2,8,8], index: 0, kind: input, shape index: {}]
  %s1 = inlined_call_operand.vmem [shape: bf16[36,8], index: 1, kind: input, shape index: {}]
  %s2 = inlined_call_operand.vmem [shape: bf16[32,16], index: 2, kind: input, shape index: {}]
  %s3 = inlined_call_operand.vmem [shape: f32[1,16], index: 3, kind: input, shape index: {}]
  %s4 = inlined_call_operand.vmem [shape: f32[1,16], index: 4, kind: input, shape index: {}]
  %s5 = inlined_call_operand.vmem [shape: f32[2,8,2,8,16], index: 5, kind: output, shape index: {}]
  %s6 = sld [smem:[#allocation0]]
  $region53: #{seg_v5_block_innermost.3} parent=0
    _
  %s8 = ssub.s32 1, %s6
  %s9 = scalar_select 0, %s8, %s6
  loop: start=0, step=1, limit=4
  $region2: #{seg_v5_block_innermost.3} parent=0 // loop_pre_header
    _
  $region3: #{seg_v5_block_innermost.3} parent=0 // loop_header
    %s11 = sphi 0, %s15
    %p12 = scmp.ge.s32.totalorder %s11, 4
    %s21 = sphi 0, %s23
    %s24 = sphi 0, %s21
    %s25 = sphi 0, %s24
    %s41 = sphi 0, %s25
    %s45 = sphi 0, %s45
    %s47 = sphi 0, %s45
    %s48 = sphi 0, %s47
    %s62 = sphi 0, %s48
    %s66 = sphi 0, %s66
    %s68 = sphi 0, %s66
    %s69 = sphi 0, %s68
    %s83 = sphi 0, %s69
    %s87 = sphi 0, %s87
    %s89 = sphi 0, %s87
    %s90 = sphi 0, %s89
    %s104 = sphi 0, %s90
    %s108 = sphi 0, %s108
    %s110 = sphi 0, %s108
    %s111 = sphi 0, %s110
    %s125 = sphi 0, %s111
    %s131 = sphi 0, %s133
    %s134 = sphi 0, %s131
    %s135 = sphi 0, %s134
    %s151 = sphi 0, %s135
  $region4: #{seg_v5_block_innermost.3} parent=0 // loop_header_branch
    %14 = sbr.rel (%p12) target = $region8
  $region5: #{seg_v5_block_innermost.3} parent=0 // loop_body
    %s16 = ssub.s32 %s11, 1
    %s17 = ssub.s32 %s11, 2
    %s18 = sadd.s32 %s11, 1
    %s19 = ssub.s32 %s11, %s18
    %p20 = scmp.eq.s32.totalorder %s19, 0
    %s22 = sadd.s32 %s21, 1
    %s23 = scalar_select %p20, %s21, %s22
    %p26 = pneg %p20
    %p27 = scmp.eq.s32.totalorder %s11, 1
    %p28 = por %p26, %p27
    %p29 = scmp.ne.s32.totalorder %s21, %s24
    %p30 = scmp.eq.s32.totalorder %s11, 0
    %p31 = por %p29, %p30
    %p32 = scmp.ne.s32.totalorder %s21, %s24
    %p33 = scmp.eq.s32.totalorder %s16, 1
    %p34 = por %p32, %p33
    %p35 = scmp.ne.s32.totalorder %s24, %s25
    %p36 = scmp.eq.s32.totalorder %s16, 0
    %p37 = por %p35, %p36
    %p38 = scmp.ne.s32.totalorder %s24, %s25
    %p39 = scmp.eq.s32.totalorder %s17, 1
    %p40 = por %p38, %p39
    %p42 = scmp.ne.s32.totalorder %s25, %s41
    %p43 = scmp.eq.s32.totalorder %s17, 0
    %p44 = por %p42, %p43
    %s46 = sadd.s32 %s45, 1
    %p49 = scmp.eq.s32.totalorder %s11, 1
    %p50 = scmp.ne.s32.totalorder %s45, %s47
    %p51 = scmp.eq.s32.totalorder %s11, 0
    %p52 = por %p50, %p51
    %p53 = scmp.ne.s32.totalorder %s45, %s47
    %p54 = scmp.eq.s32.totalorder %s16, 1
    %p55 = por %p53, %p54
    %p56 = scmp.ne.s32.totalorder %s47, %s48
    %p57 = scmp.eq.s32.totalorder %s16, 0
    %p58 = por %p56, %p57
    %p59 = scmp.ne.s32.totalorder %s47, %s48
    %p60 = scmp.eq.s32.totalorder %s17, 1
    %p61 = por %p59, %p60
    %p63 = scmp.ne.s32.totalorder %s48, %s62
    %p64 = scmp.eq.s32.totalorder %s17, 0
    %p65 = por %p63, %p64
    %s67 = sadd.s32 %s66, 1
    %p70 = scmp.eq.s32.totalorder %s11, 1
    %p71 = scmp.ne.s32.totalorder %s66, %s68
    %p72 = scmp.eq.s32.totalorder %s11, 0
    %p73 = por %p71, %p72
    %p74 = scmp.ne.s32.totalorder %s66, %s68
    %p75 = scmp.eq.s32.totalorder %s16, 1
    %p76 = por %p74, %p75
    %p77 = scmp.ne.s32.totalorder %s68, %s69
    %p78 = scmp.eq.s32.totalorder %s16, 0
    %p79 = por %p77, %p78
    %p80 = scmp.ne.s32.totalorder %s68, %s69
    %p81 = scmp.eq.s32.totalorder %s17, 1
    %p82 = por %p80, %p81
    %p84 = scmp.ne.s32.totalorder %s69, %s83
    %p85 = scmp.eq.s32.totalorder %s17, 0
    %p86 = por %p84, %p85
    %s88 = sadd.s32 %s87, 1
    %p91 = scmp.eq.s32.totalorder %s11, 1
    %p92 = scmp.ne.s32.totalorder %s87, %s89
    %p93 = scmp.eq.s32.totalorder %s11, 0
    %p94 = por %p92, %p93
    %p95 = scmp.ne.s32.totalorder %s87, %s89
    %p96 = scmp.eq.s32.totalorder %s16, 1
    %p97 = por %p95, %p96
    %p98 = scmp.ne.s32.totalorder %s89, %s90
    %p99 = scmp.eq.s32.totalorder %s16, 0
    %p100 = por %p98, %p99
    %p101 = scmp.ne.s32.totalorder %s89, %s90
    %p102 = scmp.eq.s32.totalorder %s17, 1
    %p103 = por %p101, %p102
    %p105 = scmp.ne.s32.totalorder %s90, %s104
    %p106 = scmp.eq.s32.totalorder %s17, 0
    %p107 = por %p105, %p106
    %s109 = sadd.s32 %s108, 1
    %p112 = scmp.eq.s32.totalorder %s11, 1
    %p113 = scmp.ne.s32.totalorder %s108, %s110
    %p114 = scmp.eq.s32.totalorder %s11, 0
    %p115 = por %p113, %p114
    %p116 = scmp.ne.s32.totalorder %s108, %s110
    %p117 = scmp.eq.s32.totalorder %s16, 1
    %p118 = por %p116, %p117
    %p119 = scmp.ne.s32.totalorder %s110, %s111
    %p120 = scmp.eq.s32.totalorder %s16, 0
    %p121 = por %p119, %p120
    %p122 = scmp.ne.s32.totalorder %s110, %s111
    %p123 = scmp.eq.s32.totalorder %s17, 1
    %p124 = por %p122, %p123
    %p126 = scmp.ne.s32.totalorder %s111, %s125
    %p127 = scmp.eq.s32.totalorder %s17, 0
    %p128 = por %p126, %p127
    %s129 = ssub.s32 %s11, %s18
    %p130 = scmp.eq.s32.totalorder %s129, 0
    %s132 = sadd.s32 %s131, 1
    %s133 = scalar_select %p130, %s131, %s132
    %p136 = pneg %p130
    %p137 = scmp.eq.s32.totalorder %s11, 1
    %p138 = por %p136, %p137
    %p139 = scmp.ne.s32.totalorder %s131, %s134
    %p140 = scmp.eq.s32.totalorder %s11, 0
    %p141 = por %p139, %p140
    %p142 = scmp.ne.s32.totalorder %s131, %s134
    %p143 = scmp.eq.s32.totalorder %s16, 1
    %p144 = por %p142, %p143
    %p145 = scmp.ne.s32.totalorder %s134, %s135
    %p146 = scmp.eq.s32.totalorder %s16, 0
    %p147 = por %p145, %p146
    %p148 = scmp.ne.s32.totalorder %s134, %s135
    %p149 = scmp.eq.s32.totalorder %s17, 1
    %p150 = por %p148, %p149
    %p152 = scmp.ne.s32.totalorder %s135, %s151
    %p153 = scmp.eq.s32.totalorder %s17, 0
    %p154 = por %p152, %p153
    %p155 = scmp.le.s32.totalorder 1, %s11
    %p156 = scmp.lt.s32.totalorder %s11, 3
    %p157 = pnand %p155, %p156
    %p158 = pneg %p157
    // Predicated region
    $region9: #{seg_v5_block_innermost.3} parent=5 // pred_check
      _
    $region10: #{seg_v5_block_innermost.3} parent=5 // pred_check_branch
      %160 = sbr.rel (%p157) target = $region12
    $region11: #{seg_v5_block_innermost.3} parent=5 // pred_region
      %s161 = ssub.s32 %s11, 1
      // Predicated region
      $region13: #{seg_v5_block_innermost.3} parent=11 // pred_check
        %p162 = pneg %p58
      $region14: #{seg_v5_block_innermost.3} parent=11 // pred_check_branch
        %164 = sbr.rel (%p162) target = $region16
      $region15: #{seg_v5_block_innermost.3} parent=11 // pred_region
        _
      $region16: #{seg_v5_block_innermost.3} parent=11 // pred_fallthru
        _
      // Predicated region
      $region17: #{seg_v5_block_innermost.3} parent=11 // pred_check
        %p165 = pneg %p79
      $region18: #{seg_v5_block_innermost.3} parent=11 // pred_check_branch
        %167 = sbr.rel (%p165) target = $region20
      $region19: #{seg_v5_block_innermost.3} parent=11 // pred_region
        _
      $region20: #{seg_v5_block_innermost.3} parent=11 // pred_fallthru
        _
      // Predicated region
      $region21: #{seg_v5_block_innermost.3} parent=11 // pred_check
        %p168 = pneg %p100
      $region22: #{seg_v5_block_innermost.3} parent=11 // pred_check_branch
        %170 = sbr.rel (%p168) target = $region24
      $region23: #{seg_v5_block_innermost.3} parent=11 // pred_region
        _
      $region24: #{seg_v5_block_innermost.3} parent=11 // pred_fallthru
        _
      // Predicated region
      $region25: #{seg_v5_block_innermost.3} parent=11 // pred_check
        %p171 = pneg %p121
      $region26: #{seg_v5_block_innermost.3} parent=11 // pred_check_branch
        %173 = sbr.rel (%p171) target = $region28
      $region27: #{seg_v5_block_innermost.3} parent=11 // pred_region
        _
      $region28: #{seg_v5_block_innermost.3} parent=11 // pred_fallthru
        _
    $region12: #{seg_v5_block_innermost.3} parent=5 // pred_fallthru
      _
    %p174 = scmp.lt.s32.totalorder %s11, 2
    // Predicated region
    $region29: #{seg_v5_block_innermost.3} parent=5 // pred_check
      %p175 = pneg %p174
    $region30: #{seg_v5_block_innermost.3} parent=5 // pred_check_branch
      %177 = sbr.rel (%p175) target = $region32
    $region31: #{seg_v5_block_innermost.3} parent=5 // pred_region
      // Predicated region
      $region33: #{seg_v5_block_innermost.3} parent=31 // pred_check
        %p178 = pneg %p31
      $region34: #{seg_v5_block_innermost.3} parent=31 // pred_check_branch
        %180 = sbr.rel (%p178) target = $region36
      $region35: #{seg_v5_block_innermost.3} parent=31 // pred_region
        %p181 = scmp.lt.s32.totalorder %s11, 1
        %s182 = scalar_select %p181, %s11, 1
        %s183 = smul.addr %s182, 16
        %s184 = smul.addr %s183, 8
        %s185 = scalar_lea.vmem %s0, %s184
      $region36: #{seg_v5_block_innermost.3} parent=31 // pred_fallthru
        _
    $region32: #{seg_v5_block_innermost.3} parent=5 // pred_fallthru
      _
    %p186 = scmp.le.s32.totalorder 1, %s11
    %p187 = scmp.lt.s32.totalorder %s11, 3
    %p188 = pnand %p186, %p187
    %p189 = pneg %p188
    // Predicated region
    $region37: #{seg_v5_block_innermost.3} parent=5 // pred_check
      _
    $region38: #{seg_v5_block_innermost.3} parent=5 // pred_check_branch
      %191 = sbr.rel (%p188) target = $region40
    $region39: #{seg_v5_block_innermost.3} parent=5 // pred_region
      %s192 = ssub.s32 %s11, 1
      %p193 = scmp.lt.s32.totalorder %s16, 1
      %s194 = scalar_select %p193, %s16, 1
      %s195 = smul.addr %s194, 16
      %s196 = smul.addr %s195, 8
      %s197 = scalar_lea.vmem %s0, %s196
      %p198 = pneg %p37
      %p199 = pneg %p34
      %p200 = pneg %p58
      %p201 = pneg %p55
      %p202 = pneg %p79
      %p203 = pneg %p76
      %p204 = pneg %p100
      %p205 = pneg %p97
      %p206 = pneg %p121
      %p207 = pneg %p118
      %p208 = pneg %p147
      %p209 = pneg %p144
      %p210 = scmp.lt.s32.totalorder %s16, 1
      %s211 = scalar_select %p210, %s16, 1
      %s212 = smul.addr %s211, 16
      %s213 = smul.addr %s212, 8
      %s214 = scalar_lea.vmem %s5, %s213
      %p215 = scmp.lt.s32.totalorder %s16, 1
      %s216 = scalar_select %p215, %s16, 1
      %s217 = smul.addr %s216, 16
      %s218 = smul.addr %s217, 8
      %s219 = scalar_lea.vmem %s0, %s218
      %p220 = scmp.lt.s32.totalorder %s16, 1
      %s221 = scalar_select %p220, %s16, 1
      %s222 = smul.addr %s221, 16
      %s223 = smul.addr %s222, 8
      %s224 = scalar_lea.vmem %s5, %s223
      %v226 = vld [vmem:[%s219] sm:$0xff]
      %v227 = vld [vmem:[%s219 + $0x8] sm:$0xff]
      %v228 = vld [vmem:[%s219 + $0x10] sm:$0xff]
      %v229 = vld [vmem:[%s219 + $0x18] sm:$0xff]
      %v230 = vld [vmem:[%s219 + $0x20] sm:$0xff]
      %v231 = vld [vmem:[%s219 + $0x28] sm:$0xff]
      %v232 = vld [vmem:[%s219 + $0x30] sm:$0xff]
      %v233 = vld [vmem:[%s219 + $0x38] sm:$0xff]
      %v234 = vld [vmem:[%s219 + $0x40] sm:$0xff]
      %v235 = vld [vmem:[%s219 + $0x48] sm:$0xff]
      %v236 = vld [vmem:[%s219 + $0x50] sm:$0xff]
      %v237 = vld [vmem:[%s219 + $0x58] sm:$0xff]
      %v238 = vld [vmem:[%s219 + $0x60] sm:$0xff]
      %v239 = vld [vmem:[%s219 + $0x68] sm:$0xff]
      %v240 = vld [vmem:[%s219 + $0x70] sm:$0xff]
      %v241 = vld [vmem:[%s219 + $0x78] sm:$0xff]
      %v242 = vmax.f32 %v226, 0.0
      %v243 = vmax.f32 %v228, 0.0
      %v244 = vmax.f32 %v230, 0.0
      %v245 = vmax.f32 %v232, 0.0
      %v246 = vmax.f32 %v234, 0.0
      %v247 = vmax.f32 %v236, 0.0
      %v248 = vmax.f32 %v238, 0.0
      %v249 = vmax.f32 %v240, 0.0
      %v250 = vmax.f32 %v227, 0.0
      %v251 = vmax.f32 %v229, 0.0
      %v252 = vmax.f32 %v231, 0.0
      %v253 = vmax.f32 %v233, 0.0
      %v254 = vmax.f32 %v235, 0.0
      %v255 = vmax.f32 %v237, 0.0
      %v256 = vmax.f32 %v239, 0.0
      %v257 = vmax.f32 %v241, 0.0
      %v266 = vrot.slane %v250, 7
      %v267 = vrot.slane %v251, 7
      %v268 = vrot.slane %v252, 7
      %v269 = vrot.slane %v253, 7
      %v270 = vrot.slane %v254, 7
      %v271 = vrot.slane %v255, 7
      %v272 = vrot.slane %v256, 7
      %v273 = vrot.slane %v257, 7
      %274 = vrot.lane.b32.xlu0 %v266, 124
      %v275 = vpop.permute.xlu0 %274
      %276 = vrot.lane.b32.xlu0 %v267, 124
      %v277 = vpop.permute.xlu0 %276
      %278 = vrot.lane.b32.xlu0 %v268, 124
      %v279 = vpop.permute.xlu0 %278
      %280 = vrot.lane.b32.xlu0 %v269, 124
      %v281 = vpop.permute.xlu0 %280
      %282 = vrot.lane.b32.xlu0 %v270, 124
      %v283 = vpop.permute.xlu0 %282
      %284 = vrot.lane.b32.xlu0 %v271, 124
      %v285 = vpop.permute.xlu0 %284
      %286 = vrot.lane.b32.xlu0 %v272, 124
      %v287 = vpop.permute.xlu0 %286
      %288 = vrot.lane.b32.xlu0 %v273, 124
      %v289 = vpop.permute.xlu0 %288
      %vm298 = vcmask 1040384
      %v299 = vsel %vm298, 0.0, %v275
      %v300 = vsel %vm298, 0.0, %v277
      %v301 = vsel %vm298, 0.0, %v279
      %v302 = vsel %vm298, 0.0, %v281
      %v303 = vsel %vm298, 0.0, %v283
      %v304 = vsel %vm298, 0.0, %v285
      %v305 = vsel %vm298, 0.0, %v287
      %v306 = vsel %vm298, 0.0, %v289
      %307 = vrot.lane.b32.xlu0 %v250, 124
      %v308 = vpop.permute.xlu0 %307
      %309 = vrot.lane.b32.xlu0 %v251, 124
      %v310 = vpop.permute.xlu0 %309
      %311 = vrot.lane.b32.xlu0 %v252, 124
      %v312 = vpop.permute.xlu0 %311
      %313 = vrot.lane.b32.xlu0 %v253, 124
      %v314 = vpop.permute.xlu0 %313
      %315 = vrot.lane.b32.xlu0 %v254, 124
      %v316 = vpop.permute.xlu0 %315
      %317 = vrot.lane.b32.xlu0 %v255, 124
      %v318 = vpop.permute.xlu0 %317
      %319 = vrot.lane.b32.xlu0 %v256, 124
      %v320 = vpop.permute.xlu0 %319
      %v329 = vrot.slane %v242, 7
      %v330 = vrot.slane %v243, 7
      %v331 = vrot.slane %v244, 7
      %v332 = vrot.slane %v245, 7
      %v333 = vrot.slane %v246, 7
      %v334 = vrot.slane %v247, 7
      %v335 = vrot.slane %v248, 7
      %v336 = vrot.slane %v249, 7
      %337 = vrot.lane.b32.xlu0 %v329, 124
      %v338 = vpop.permute.xlu0 %337
      %339 = vrot.lane.b32.xlu0 %v330, 124
      %v340 = vpop.permute.xlu0 %339
      %341 = vrot.lane.b32.xlu0 %v331, 124
      %v342 = vpop.permute.xlu0 %341
      %343 = vrot.lane.b32.xlu0 %v332, 124
      %v344 = vpop.permute.xlu0 %343
      %345 = vrot.lane.b32.xlu0 %v333, 124
      %v346 = vpop.permute.xlu0 %345
      %347 = vrot.lane.b32.xlu0 %v334, 124
      %v348 = vpop.permute.xlu0 %347
      %349 = vrot.lane.b32.xlu0 %v335, 124
      %v350 = vpop.permute.xlu0 %349
      %351 = vrot.lane.b32.xlu0 %v336, 124
      %v352 = vpop.permute.xlu0 %351
      %v361 = vsel %vm298, 0.0, %v338
      %v362 = vsel %vm298, 0.0, %v340
      %v363 = vsel %vm298, 0.0, %v342
      %v364 = vsel %vm298, 0.0, %v344
      %v365 = vsel %vm298, 0.0, %v346
      %v366 = vsel %vm298, 0.0, %v348
      %v367 = vsel %vm298, 0.0, %v350
      %v368 = vsel %vm298, 0.0, %v352
      %370 = vrot.lane.b32.xlu0 0.0, 4
      %v371 = vpop.permute.xlu0 %370
      %372 = vrot.lane.b32.xlu0 %v250, 4
      %v373 = vpop.permute.xlu0 %372
      %374 = vrot.lane.b32.xlu0 %v251, 4
      %v375 = vpop.permute.xlu0 %374
      %376 = vrot.lane.b32.xlu0 %v252, 4
      %v377 = vpop.permute.xlu0 %376
      %378 = vrot.lane.b32.xlu0 %v253, 4
      %v379 = vpop.permute.xlu0 %378
      %380 = vrot.lane.b32.xlu0 %v254, 4
      %v381 = vpop.permute.xlu0 %380
      %382 = vrot.lane.b32.xlu0 %v255, 4
      %v383 = vpop.permute.xlu0 %382
      %384 = vrot.lane.b32.xlu0 %v256, 4
      %v385 = vpop.permute.xlu0 %384
      %394 = vrot.lane.b32.xlu0 0.0, 8
      %v395 = vpop.permute.xlu0 %394
      %396 = vrot.lane.b32.xlu0 %v308, 8
      %v397 = vpop.permute.xlu0 %396
      %398 = vrot.lane.b32.xlu0 %v310, 8
      %v399 = vpop.permute.xlu0 %398
      %400 = vrot.lane.b32.xlu0 %v312, 8
      %v401 = vpop.permute.xlu0 %400
      %402 = vrot.lane.b32.xlu0 %v314, 8
      %v403 = vpop.permute.xlu0 %402
      %404 = vrot.lane.b32.xlu0 %v316, 8
      %v405 = vpop.permute.xlu0 %404
      %406 = vrot.lane.b32.xlu0 %v318, 8
      %v407 = vpop.permute.xlu0 %406
      %408 = vrot.lane.b32.xlu0 %v320, 8
      %v409 = vpop.permute.xlu0 %408
      %426 = vrot.lane.b32.xlu0 %v361, 12
      %v427 = vpop.permute.xlu0 %426
      %428 = vrot.lane.b32.xlu0 %v362, 12
      %v429 = vpop.permute.xlu0 %428
      %430 = vrot.lane.b32.xlu0 %v363, 12
      %v431 = vpop.permute.xlu0 %430
      %432 = vrot.lane.b32.xlu0 %v364, 12
      %v433 = vpop.permute.xlu0 %432
      %434 = vrot.lane.b32.xlu0 %v365, 12
      %v435 = vpop.permute.xlu0 %434
      %436 = vrot.lane.b32.xlu0 %v366, 12
      %v437 = vpop.permute.xlu0 %436
      %438 = vrot.lane.b32.xlu0 %v367, 12
      %v439 = vpop.permute.xlu0 %438
      %440 = vrot.lane.b32.xlu0 %v368, 12
      %v441 = vpop.permute.xlu0 %440
      %450 = vrot.lane.b32.xlu0 %v242, 16
      %v451 = vpop.permute.xlu0 %450
      %452 = vrot.lane.b32.xlu0 %v243, 16
      %v453 = vpop.permute.xlu0 %452
      %454 = vrot.lane.b32.xlu0 %v244, 16
      %v455 = vpop.permute.xlu0 %454
      %456 = vrot.lane.b32.xlu0 %v245, 16
      %v457 = vpop.permute.xlu0 %456
      %458 = vrot.lane.b32.xlu0 %v246, 16
      %v459 = vpop.permute.xlu0 %458
      %460 = vrot.lane.b32.xlu0 %v247, 16
      %v461 = vpop.permute.xlu0 %460
      %462 = vrot.lane.b32.xlu0 %v248, 16
      %v463 = vpop.permute.xlu0 %462
      %464 = vrot.lane.b32.xlu0 %v249, 16
      %v465 = vpop.permute.xlu0 %464
      %482 = vrot.lane.b32.xlu0 %v299, 24
      %v483 = vpop.permute.xlu0 %482
      %484 = vrot.lane.b32.xlu0 %v300, 24
      %v485 = vpop.permute.xlu0 %484
      %486 = vrot.lane.b32.xlu0 %v301, 24
      %v487 = vpop.permute.xlu0 %486
      %488 = vrot.lane.b32.xlu0 %v302, 24
      %v489 = vpop.permute.xlu0 %488
      %490 = vrot.lane.b32.xlu0 %v303, 24
      %v491 = vpop.permute.xlu0 %490
      %492 = vrot.lane.b32.xlu0 %v304, 24
      %v493 = vpop.permute.xlu0 %492
      %494 = vrot.lane.b32.xlu0 %v305, 24
      %v495 = vpop.permute.xlu0 %494
      %496 = vrot.lane.b32.xlu0 %v306, 24
      %v497 = vpop.permute.xlu0 %496
      %506 = vrot.lane.b32.xlu0 %v250, 28
      %v507 = vpop.permute.xlu0 %506
      %508 = vrot.lane.b32.xlu0 %v251, 28
      %v509 = vpop.permute.xlu0 %508
      %510 = vrot.lane.b32.xlu0 %v252, 28
      %v511 = vpop.permute.xlu0 %510
      %512 = vrot.lane.b32.xlu0 %v253, 28
      %v513 = vpop.permute.xlu0 %512
      %514 = vrot.lane.b32.xlu0 %v254, 28
      %v515 = vpop.permute.xlu0 %514
      %516 = vrot.lane.b32.xlu0 %v255, 28
      %v517 = vpop.permute.xlu0 %516
      %518 = vrot.lane.b32.xlu0 %v256, 28
      %v519 = vpop.permute.xlu0 %518
      %520 = vrot.lane.b32.xlu0 %v257, 28
      %v521 = vpop.permute.xlu0 %520
      %vm530 = vcmask 31744
      %v531 = vsel %vm530, 0.0, %v371
      %v532 = vsel %vm530, %v299, %v373
      %v533 = vsel %vm530, %v300, %v375
      %v534 = vsel %vm530, %v301, %v377
      %v535 = vsel %vm530, %v302, %v379
      %v536 = vsel %vm530, %v303, %v381
      %v537 = vsel %vm530, %v304, %v383
      %v538 = vsel %vm530, %v305, %v385
      %vm539 = vcmask 64512
      %v540 = vsel %vm539, %v531, %v395
      %v541 = vsel %vm539, %v532, %v397
      %v542 = vsel %vm539, %v533, %v399
      %v543 = vsel %vm539, %v534, %v401
      %v544 = vsel %vm539, %v535, %v403
      %v545 = vsel %vm539, %v536, %v405
      %v546 = vsel %vm539, %v537, %v407
      %v547 = vsel %vm539, %v538, %v409
      %vm548 = vcmask 97280
      %v549 = vsel %vm548, %v540, %v427
      %v550 = vsel %vm548, %v541, %v429
      %v551 = vsel %vm548, %v542, %v431
      %v552 = vsel %vm548, %v543, %v433
      %v553 = vsel %vm548, %v544, %v435
      %v554 = vsel %vm548, %v545, %v437
      %v555 = vsel %vm548, %v546, %v439
      %v556 = vsel %vm548, %v547, %v441
      %vm557 = vcmask 130048
      %v558 = vsel %vm557, %v549, %v451
      %v559 = vsel %vm557, %v550, %v453
      %v560 = vsel %vm557, %v551, %v455
      %v561 = vsel %vm557, %v552, %v457
      %v562 = vsel %vm557, %v553, %v459
      %v563 = vsel %vm557, %v554, %v461
      %v564 = vsel %vm557, %v555, %v463
      %v565 = vsel %vm557, %v556, %v465
      %vm566 = vcmask 162816
      %v567 = vsel %vm566, %v558, %v451
      %v568 = vsel %vm566, %v559, %v453
      %v569 = vsel %vm566, %v560, %v455
      %v570 = vsel %vm566, %v561, %v457
      %v571 = vsel %vm566, %v562, %v459
      %v572 = vsel %vm566, %v563, %v461
      %v573 = vsel %vm566, %v564, %v463
      %v574 = vsel %vm566, %v565, %v465
      %vm575 = vcmask 195584
      %v576 = vsel %vm575, %v567, %v483
      %v577 = vsel %vm575, %v568, %v485
      %v578 = vsel %vm575, %v569, %v487
      %v579 = vsel %vm575, %v570, %v489
      %v580 = vsel %vm575, %v571, %v491
      %v581 = vsel %vm575, %v572, %v493
      %v582 = vsel %vm575, %v573, %v495
      %v583 = vsel %vm575, %v574, %v497
      %vm584 = vcmask 228352
      %v585 = vsel %vm584, %v576, %v507
      %v586 = vsel %vm584, %v577, %v509
      %v587 = vsel %vm584, %v578, %v511
      %v588 = vsel %vm584, %v579, %v513
      %v589 = vsel %vm584, %v580, %v515
      %v590 = vsel %vm584, %v581, %v517
      %v591 = vsel %vm584, %v582, %v519
      %v592 = vsel %vm584, %v583, %v521
      %vm593 = vcmask 261120
      %v594 = vsel %vm593, %v585, %v507
      %v595 = vsel %vm593, %v586, %v509
      %v596 = vsel %vm593, %v587, %v511
      %v597 = vsel %vm593, %v588, %v513
      %v598 = vsel %vm593, %v589, %v515
      %v599 = vsel %vm593, %v590, %v517
      %v600 = vsel %vm593, %v591, %v519
      %v601 = vsel %vm593, %v592, %v521
      %v602 = vpack.c.bf16 %v595, %v594
      %v603 = vpack.c.bf16 %v597, %v596
      %v604 = vpack.c.bf16 %v599, %v598
      %v605 = vpack.c.bf16 %v601, %v600
      %v606 = vld [vmem:[%s1] sm:$0xf]
      %v607 = vld [vmem:[%s1 + $0x4] sm:$0xf]
      %v608 = vld [vmem:[%s1 + $0x8] sm:$0xf]
      %v609 = vld [vmem:[%s1 + $0xc] sm:$0xf]
      %v610 = vld [vmem:[%s1 + $0x10] sm:$0x3]
      %v616 = vunpack.c.l.b16 %v606
      %v617 = vunpack.c.l.b16 %v607
      %v618 = vunpack.c.l.b16 %v608
      %v619 = vunpack.c.l.b16 %v609
      %v620 = vunpack.c.l.b16 %v610
      %v621 = vpack.c.b16 %v617, %v616
      %v622 = vpack.c.b16 %v619, %v618
      %v623 = vpack.c.b16 %v620, %v620
      %vm626 = vcmask 293888
      %v628 = vsel %vm626, %v602, 0
      %v631 = vsel %vm626, %v603, 0
      %v634 = vsel %vm626, %v604, 0
      %v637 = vsel %vm626, %v605, 0
      %vm639 = vcmask 1041408
      %v641 = vsel %vm639, %v623, 0
      %643 = vmatprep.subr.bf16.mxu0 0
      %644 = vmatpush1.bf16.msra.mxu0 0
      %645 = vmatprep.subr.bf16.mxu0 0
      %646 = vmatpush1.bf16.msra.mxu0 0
      %647 = vmatprep.subr.bf16.mxu0 0
      %648 = vmatpush1.bf16.msra.mxu0 0
      %649 = vmatprep.subr.bf16.mxu0 0
      %650 = vmatpush1.bf16.msra.mxu0 0
      %651 = vmatprep.subr.bf16.mxu0 0
      %652 = vmatpush1.bf16.msra.mxu0 0
      %653 = vmatprep.subr.bf16.mxu0 0
      %654 = vmatpush1.bf16.msra.mxu0 %v641
      %655 = vmatprep.subr.bf16.mxu0 0
      %656 = vmatpush1.bf16.msra.mxu0 %v622
      %657 = vmatprep.subr.bf16.mxu0 0
      %658 = vmatpush1.bf16.msra.mxu0 %v621
      %659 = vmatprep.subr.bf16.mxu0 0
      %660 = vmatpush2.bf16.msra.mxu0 0
      %661 = vmatprep.subr.bf16.mxu0 0
      %662 = vmatpush2.bf16.msra.mxu0 0
      %663 = vmatprep.subr.bf16.mxu0 0
      %664 = vmatpush2.bf16.msra.mxu0 0
      %665 = vmatprep.subr.bf16.mxu0 0
      %666 = vmatpush2.bf16.msra.mxu0 0
      %667 = vmatprep.subr.bf16.mxu0 0
      %668 = vmatpush2.bf16.msra.mxu0 0
      %669 = vmatprep.subr.bf16.mxu0 0
      %670 = vmatpush2.bf16.msra.mxu0 0
      %671 = vmatprep.subr.bf16.mxu0 0
      %672 = vmatpush2.bf16.msra.mxu0 0
      %673 = vmatprep.subr.bf16.mxu0 0
      %674 = vmatpush2.bf16.msra.mxu0 0
      %675 = vmatprep.mubr.bf16.mxu0 0
      %676 = vmatmul.mubr.bf16.gmra.mxu0 %v628
      %v677 = vpop.f32.mrf.mxu0
      %v678 = vadd.f32 0.0, %v677
      %v679 = vpop.f32.mrf.mxu0
      %v680 = vpop.f32.mrf.mxu0
      %v681 = vadd.f32 0.0, %v680
      %v682 = vpop.f32.mrf.mxu0
      %683 = vmatprep.mubr.bf16.mxu0 0
      %684 = vmatmul.mubr.bf16.gmra.mxu0 %v631
      %v685 = vpop.f32.mrf.mxu0
      %v686 = vadd.f32 0.0, %v685
      %v687 = vpop.f32.mrf.mxu0
      %v688 = vpop.f32.mrf.mxu0
      %v689 = vadd.f32 0.0, %v688
      %v690 = vpop.f32.mrf.mxu0
      %691 = vmatprep.mubr.bf16.mxu0 0
      %692 = vmatmul.mubr.bf16.gmra.mxu0 %v634
      %v693 = vpop.f32.mrf.mxu0
      %v694 = vadd.f32 0.0, %v693
      %v695 = vpop.f32.mrf.mxu0
      %v696 = vpop.f32.mrf.mxu0
      %v697 = vadd.f32 0.0, %v696
      %v698 = vpop.f32.mrf.mxu0
      %699 = vmatprep.mubr.bf16.mxu0 0
      %700 = vmatmul.mubr.bf16.gmra.mxu0 %v637
      %v701 = vpop.f32.mrf.mxu0
      %v702 = vadd.f32 0.0, %v701
      %v703 = vpop.f32.mrf.mxu0
      %v704 = vpop.f32.mrf.mxu0
      %v705 = vadd.f32 0.0, %v704
      %v706 = vpop.f32.mrf.mxu0
      %707 = vdwg.mxu0
      %v708 = vmax.f32 %v678, 0.0
      %v709 = vmax.f32 %v681, 0.0
      %v710 = vmax.f32 %v686, 0.0
      %v711 = vmax.f32 %v689, 0.0
      %v712 = vmax.f32 %v694, 0.0
      %v713 = vmax.f32 %v697, 0.0
      %v714 = vmax.f32 %v702, 0.0
      %v715 = vmax.f32 %v705, 0.0
      %v724 = vrot.slane %v708, 1
      %v725 = vrot.slane %v709, 1
      %v726 = vrot.slane %v710, 1
      %v727 = vrot.slane %v711, 1
      %v728 = vrot.slane %v712, 1
      %v729 = vrot.slane %v713, 1
      %v730 = vrot.slane %v714, 1
      %v731 = vrot.slane %v715, 1
      %vm740 = vcmask 1046528
      %v741 = vsel %vm740, %v724, 0.0
      %v742 = vsel %vm740, %v725, 0.0
      %v743 = vsel %vm740, %v726, 0.0
      %v744 = vsel %vm740, %v727, 0.0
      %v745 = vsel %vm740, %v728, 0.0
      %v746 = vsel %vm740, %v729, 0.0
      %v747 = vsel %vm740, %v730, 0.0
      %v748 = vsel %vm740, %v731, 0.0
      %757 = vrot.lane.b32.xlu0 %v741, 8
      %v758 = vpop.permute.xlu0 %757
      %759 = vrot.lane.b32.xlu0 %v742, 8
      %v760 = vpop.permute.xlu0 %759
      %761 = vrot.lane.b32.xlu0 %v743, 8
      %v762 = vpop.permute.xlu0 %761
      %763 = vrot.lane.b32.xlu0 %v744, 8
      %v764 = vpop.permute.xlu0 %763
      %765 = vrot.lane.b32.xlu0 %v745, 8
      %v766 = vpop.permute.xlu0 %765
      %767 = vrot.lane.b32.xlu0 %v746, 8
      %v768 = vpop.permute.xlu0 %767
      %769 = vrot.lane.b32.xlu0 %v747, 8
      %v770 = vpop.permute.xlu0 %769
      %771 = vrot.lane.b32.xlu0 %v748, 8
      %v772 = vpop.permute.xlu0 %771
      %781 = vrot.lane.b32.xlu0 %v709, 16
      %v782 = vpop.permute.xlu0 %781
      %783 = vrot.lane.b32.xlu0 %v710, 16
      %v784 = vpop.permute.xlu0 %783
      %785 = vrot.lane.b32.xlu0 %v711, 16
      %v786 = vpop.permute.xlu0 %785
      %787 = vrot.lane.b32.xlu0 %v712, 16
      %v788 = vpop.permute.xlu0 %787
      %789 = vrot.lane.b32.xlu0 %v713, 16
      %v790 = vpop.permute.xlu0 %789
      %791 = vrot.lane.b32.xlu0 %v714, 16
      %v792 = vpop.permute.xlu0 %791
      %793 = vrot.lane.b32.xlu0 %v715, 16
      %v794 = vpop.permute.xlu0 %793
      %795 = vrot.lane.b32.xlu0 0.0, 16
      %v796 = vpop.permute.xlu0 %795
      %805 = vrot.lane.b32.xlu0 %v742, 24
      %v806 = vpop.permute.xlu0 %805
      %807 = vrot.lane.b32.xlu0 %v743, 24
      %v808 = vpop.permute.xlu0 %807
      %809 = vrot.lane.b32.xlu0 %v744, 24
      %v810 = vpop.permute.xlu0 %809
      %811 = vrot.lane.b32.xlu0 %v745, 24
      %v812 = vpop.permute.xlu0 %811
      %813 = vrot.lane.b32.xlu0 %v746, 24
      %v814 = vpop.permute.xlu0 %813
      %815 = vrot.lane.b32.xlu0 %v747, 24
      %v816 = vpop.permute.xlu0 %815
      %817 = vrot.lane.b32.xlu0 %v748, 24
      %v818 = vpop.permute.xlu0 %817
      %819 = vrot.lane.b32.xlu0 0.0, 24
      %v820 = vpop.permute.xlu0 %819
      %v829 = vsel %vm539, %v708, %v758
      %v830 = vsel %vm539, %v709, %v760
      %v831 = vsel %vm539, %v710, %v762
      %v832 = vsel %vm539, %v711, %v764
      %v833 = vsel %vm539, %v712, %v766
      %v834 = vsel %vm539, %v713, %v768
      %v835 = vsel %vm539, %v714, %v770
      %v836 = vsel %vm539, %v715, %v772
      %v837 = vsel %vm557, %v829, %v782
      %v838 = vsel %vm557, %v830, %v784
      %v839 = vsel %vm557, %v831, %v786
      %v840 = vsel %vm557, %v832, %v788
      %v841 = vsel %vm557, %v833, %v790
      %v842 = vsel %vm557, %v834, %v792
      %v843 = vsel %vm557, %v835, %v794
      %v844 = vsel %vm557, %v836, %v796
      %v845 = vsel %vm575, %v837, %v806
      %v846 = vsel %vm575, %v838, %v808
      %v847 = vsel %vm575, %v839, %v810
      %v848 = vsel %vm575, %v840, %v812
      %v849 = vsel %vm575, %v841, %v814
      %v850 = vsel %vm575, %v842, %v816
      %v851 = vsel %vm575, %v843, %v818
      %v852 = vsel %vm575, %v844, %v820
      %v853 = vpack.c.bf16 %v846, %v845
      %v854 = vpack.c.bf16 %v848, %v847
      %v855 = vpack.c.bf16 %v850, %v849
      %v856 = vpack.c.bf16 %v852, %v851
      %v857 = vld [vmem:[%s2] sm:$0xf]
      %v858 = vld [vmem:[%s2 + $0x4] sm:$0xf]
      %v859 = vld [vmem:[%s2 + $0x8] sm:$0xf]
      %v860 = vld [vmem:[%s2 + $0xc] sm:$0xf]
      %v865 = vunpack.c.l.b16 %v857
      %v866 = vunpack.c.l.b16 %v858
      %v867 = vunpack.c.l.b16 %v859
      %v868 = vunpack.c.l.b16 %v860
      %v869 = vpack.c.b16 %v866, %v865
      %v870 = vpack.c.b16 %v868, %v867
      %v874 = vsel %vm593, %v853, 0
      %v877 = vsel %vm593, %v854, 0
      %v880 = vsel %vm593, %v855, 0
      %v883 = vsel %vm593, %v856, 0
      %885 = vmatprep.subr.bf16.mxu0 0
      %886 = vmatpush1.bf16.msra.mxu0 0
      %887 = vmatprep.subr.bf16.mxu0 0
      %888 = vmatpush1.bf16.msra.mxu0 0
      %889 = vmatprep.subr.bf16.mxu0 0
      %890 = vmatpush1.bf16.msra.mxu0 0
      %891 = vmatprep.subr.bf16.mxu0 0
      %892 = vmatpush1.bf16.msra.mxu0 0
      %893 = vmatprep.subr.bf16.mxu0 0
      %894 = vmatpush1.bf16.msra.mxu0 0
      %895 = vmatprep.subr.bf16.mxu0 0
      %896 = vmatpush1.bf16.msra.mxu0 0
      %897 = vmatprep.subr.bf16.mxu0 0
      %898 = vmatpush1.bf16.msra.mxu0 %v870
      %899 = vmatprep.subr.bf16.mxu0 0
      %900 = vmatpush1.bf16.msra.mxu0 %v869
      %901 = vmatprep.subr.bf16.mxu0 0
      %902 = vmatpush2.bf16.msra.mxu0 0
      %903 = vmatprep.subr.bf16.mxu0 0
      %904 = vmatpush2.bf16.msra.mxu0 0
      %905 = vmatprep.subr.bf16.mxu0 0
      %906 = vmatpush2.bf16.msra.mxu0 0
      %907 = vmatprep.subr.bf16.mxu0 0
      %908 = vmatpush2.bf16.msra.mxu0 0
      %909 = vmatprep.subr.bf16.mxu0 0
      %910 = vmatpush2.bf16.msra.mxu0 0
      %911 = vmatprep.subr.bf16.mxu0 0
      %912 = vmatpush2.bf16.msra.mxu0 0
      %913 = vmatprep.subr.bf16.mxu0 0
      %914 = vmatpush2.bf16.msra.mxu0 0
      %915 = vmatprep.subr.bf16.mxu0 0
      %916 = vmatpush2.bf16.msra.mxu0 0
      %917 = vmatprep.mubr.bf16.mxu0 0
      %918 = vmatmul.mubr.bf16.gmra.mxu0 %v874
      %v919 = vpop.f32.mrf.mxu0
      %v920 = vadd.f32 0.0, %v919
      %v921 = vpop.f32.mrf.mxu0
      %v922 = vpop.f32.mrf.mxu0
      %v923 = vadd.f32 0.0, %v922
      %v924 = vpop.f32.mrf.mxu0
      %925 = vmatprep.mubr.bf16.mxu0 0
      %926 = vmatmul.mubr.bf16.gmra.mxu0 %v877
      %v927 = vpop.f32.mrf.mxu0
      %v928 = vadd.f32 0.0, %v927
      %v929 = vpop.f32.mrf.mxu0
      %v930 = vpop.f32.mrf.mxu0
      %v931 = vadd.f32 0.0, %v930
      %v932 = vpop.f32.mrf.mxu0
      %933 = vmatprep.mubr.bf16.mxu0 0
      %934 = vmatmul.mubr.bf16.gmra.mxu0 %v880
      %v935 = vpop.f32.mrf.mxu0
      %v936 = vadd.f32 0.0, %v935
      %v937 = vpop.f32.mrf.mxu0
      %v938 = vpop.f32.mrf.mxu0
      %v939 = vadd.f32 0.0, %v938
      %v940 = vpop.f32.mrf.mxu0
      %941 = vmatprep.mubr.bf16.mxu0 0
      %942 = vmatmul.mubr.bf16.gmra.mxu0 %v883
      %v943 = vpop.f32.mrf.mxu0
      %v944 = vadd.f32 0.0, %v943
      %v945 = vpop.f32.mrf.mxu0
      %v946 = vpop.f32.mrf.mxu0
      %v947 = vadd.f32 0.0, %v946
      %v948 = vpop.f32.mrf.mxu0
      %949 = vdwg.mxu0
      %v950 = vld [vmem:[%s3] sm:$0x1]
      %v952 = vlaneseq
      %v953 = vshrl.u32 %v952, 7
      %v954 = vsub.s32 0, %v953
      %v955 = vrot.slane %v950, %v954
      %v957 = vmul.f32 %v920, %v955
      %v958 = vmul.f32 %v923, %v955
      %v959 = vmul.f32 %v928, %v955
      %v960 = vmul.f32 %v931, %v955
      %v961 = vmul.f32 %v936, %v955
      %v962 = vmul.f32 %v939, %v955
      %v963 = vmul.f32 %v944, %v955
      %v964 = vmul.f32 %v947, %v955
      %v965 = vld [vmem:[%s4] sm:$0x1]
      %v967 = vlaneseq
      %v968 = vshrl.u32 %v967, 7
      %v969 = vsub.s32 0, %v968
      %v970 = vrot.slane %v965, %v969
      %v972 = vadd.f32 %v957, %v970
      %v973 = vadd.f32 %v958, %v970
      %v974 = vadd.f32 %v959, %v970
      %v975 = vadd.f32 %v960, %v970
      %v976 = vadd.f32 %v961, %v970
      %v977 = vadd.f32 %v962, %v970
      %v978 = vadd.f32 %v963, %v970
      %v979 = vadd.f32 %v964, %v970
      %988 = vrot.lane.b32.xlu0 %v972, 4
      %v989 = vpop.permute.xlu0 %988
      %990 = vrot.lane.b32.xlu0 %v973, 4
      %v991 = vpop.permute.xlu0 %990
      %992 = vrot.lane.b32.xlu0 %v974, 4
      %v993 = vpop.permute.xlu0 %992
      %994 = vrot.lane.b32.xlu0 %v975, 4
      %v995 = vpop.permute.xlu0 %994
      %996 = vrot.lane.b32.xlu0 %v976, 4
      %v997 = vpop.permute.xlu0 %996
      %998 = vrot.lane.b32.xlu0 %v977, 4
      %v999 = vpop.permute.xlu0 %998
      %1000 = vrot.lane.b32.xlu0 %v978, 4
      %v1001 = vpop.permute.xlu0 %1000
      %1002 = vrot.lane.b32.xlu0 %v979, 4
      %v1003 = vpop.permute.xlu0 %1002
      %1020 = vrot.lane.b32.xlu0 %v226, 4
      %v1021 = vpop.permute.xlu0 %1020
      %1022 = vrot.lane.b32.xlu0 %v228, 4
      %v1023 = vpop.permute.xlu0 %1022
      %1024 = vrot.lane.b32.xlu0 %v230, 4
      %v1025 = vpop.permute.xlu0 %1024
      %1026 = vrot.lane.b32.xlu0 %v232, 4
      %v1027 = vpop.permute.xlu0 %1026
      %1028 = vrot.lane.b32.xlu0 %v234, 4
      %v1029 = vpop.permute.xlu0 %1028
      %1030 = vrot.lane.b32.xlu0 %v236, 4
      %v1031 = vpop.permute.xlu0 %1030
      %1032 = vrot.lane.b32.xlu0 %v238, 4
      %v1033 = vpop.permute.xlu0 %1032
      %1034 = vrot.lane.b32.xlu0 %v240, 4
      %v1035 = vpop.permute.xlu0 %1034
      %1044 = vrot.lane.b32.xlu0 %v972, 8
      %v1045 = vpop.permute.xlu0 %1044
      %1046 = vrot.lane.b32.xlu0 %v973, 8
      %v1047 = vpop.permute.xlu0 %1046
      %1048 = vrot.lane.b32.xlu0 %v974, 8
      %v1049 = vpop.permute.xlu0 %1048
      %1050 = vrot.lane.b32.xlu0 %v975, 8
      %v1051 = vpop.permute.xlu0 %1050
      %1052 = vrot.lane.b32.xlu0 %v976, 8
      %v1053 = vpop.permute.xlu0 %1052
      %1054 = vrot.lane.b32.xlu0 %v977, 8
      %v1055 = vpop.permute.xlu0 %1054
      %1056 = vrot.lane.b32.xlu0 %v978, 8
      %v1057 = vpop.permute.xlu0 %1056
      %1058 = vrot.lane.b32.xlu0 %v979, 8
      %v1059 = vpop.permute.xlu0 %1058
      %v1068 = vsel %vm530, %v226, %v989
      %v1069 = vsel %vm530, %v228, %v991
      %v1070 = vsel %vm530, %v230, %v993
      %v1071 = vsel %vm530, %v232, %v995
      %v1072 = vsel %vm530, %v234, %v997
      %v1073 = vsel %vm530, %v236, %v999
      %v1074 = vsel %vm530, %v238, %v1001
      %v1075 = vsel %vm530, %v240, %v1003
      %v1076 = vsel %vm539, %v1068, %v1021
      %v1077 = vsel %vm539, %v1069, %v1023
      %v1078 = vsel %vm539, %v1070, %v1025
      %v1079 = vsel %vm539, %v1071, %v1027
      %v1080 = vsel %vm539, %v1072, %v1029
      %v1081 = vsel %vm539, %v1073, %v1031
      %v1082 = vsel %vm539, %v1074, %v1033
      %v1083 = vsel %vm539, %v1075, %v1035
      %v1084 = vsel %vm548, %v1076, %v1045
      %v1085 = vsel %vm548, %v1077, %v1047
      %v1086 = vsel %vm548, %v1078, %v1049
      %v1087 = vsel %vm548, %v1079, %v1051
      %v1088 = vsel %vm548, %v1080, %v1053
      %v1089 = vsel %vm548, %v1081, %v1055
      %v1090 = vsel %vm548, %v1082, %v1057
      %v1091 = vsel %vm548, %v1083, %v1059
      %1092 = vst.msk [vmem:[%s224] sm:$0xff] %vm557, %v1084
      %1093 = vst.msk [vmem:[%s224 + $0x10] sm:$0xff] %vm557, %v1085
      %1094 = vst.msk [vmem:[%s224 + $0x20] sm:$0xff] %vm557, %v1086
      %1095 = vst.msk [vmem:[%s224 + $0x30] sm:$0xff] %vm557, %v1087
      %1096 = vst.msk [vmem:[%s224 + $0x40] sm:$0xff] %vm557, %v1088
      %1097 = vst.msk [vmem:[%s224 + $0x50] sm:$0xff] %vm557, %v1089
      %1098 = vst.msk [vmem:[%s224 + $0x60] sm:$0xff] %vm557, %v1090
      %1099 = vst.msk [vmem:[%s224 + $0x70] sm:$0xff] %vm557, %v1091
      %1100 = vrot.lane.b32.xlu0 %v972, 124
      %v1101 = vpop.permute.xlu0 %1100
      %1102 = vrot.lane.b32.xlu0 %v973, 124
      %v1103 = vpop.permute.xlu0 %1102
      %1104 = vrot.lane.b32.xlu0 %v974, 124
      %v1105 = vpop.permute.xlu0 %1104
      %1106 = vrot.lane.b32.xlu0 %v975, 124
      %v1107 = vpop.permute.xlu0 %1106
      %1108 = vrot.lane.b32.xlu0 %v976, 124
      %v1109 = vpop.permute.xlu0 %1108
      %1110 = vrot.lane.b32.xlu0 %v977, 124
      %v1111 = vpop.permute.xlu0 %1110
      %1112 = vrot.lane.b32.xlu0 %v978, 124
      %v1113 = vpop.permute.xlu0 %1112
      %1114 = vrot.lane.b32.xlu0 %v979, 124
      %v1115 = vpop.permute.xlu0 %1114
      %1132 = vrot.lane.b32.xlu0 %v227, 4
      %v1133 = vpop.permute.xlu0 %1132
      %1134 = vrot.lane.b32.xlu0 %v229, 4
      %v1135 = vpop.permute.xlu0 %1134
      %1136 = vrot.lane.b32.xlu0 %v231, 4
      %v1137 = vpop.permute.xlu0 %1136
      %1138 = vrot.lane.b32.xlu0 %v233, 4
      %v1139 = vpop.permute.xlu0 %1138
      %1140 = vrot.lane.b32.xlu0 %v235, 4
      %v1141 = vpop.permute.xlu0 %1140
      %1142 = vrot.lane.b32.xlu0 %v237, 4
      %v1143 = vpop.permute.xlu0 %1142
      %1144 = vrot.lane.b32.xlu0 %v239, 4
      %v1145 = vpop.permute.xlu0 %1144
      %1146 = vrot.lane.b32.xlu0 %v241, 4
      %v1147 = vpop.permute.xlu0 %1146
      %v1156 = vsel %vm530, %v227, %v1101
      %v1157 = vsel %vm530, %v229, %v1103
      %v1158 = vsel %vm530, %v231, %v1105
      %v1159 = vsel %vm530, %v233, %v1107
      %v1160 = vsel %vm530, %v235, %v1109
      %v1161 = vsel %vm530, %v237, %v1111
      %v1162 = vsel %vm530, %v239, %v1113
      %v1163 = vsel %vm530, %v241, %v1115
      %v1164 = vsel %vm539, %v1156, %v1133
      %v1165 = vsel %vm539, %v1157, %v1135
      %v1166 = vsel %vm539, %v1158, %v1137
      %v1167 = vsel %vm539, %v1159, %v1139
      %v1168 = vsel %vm539, %v1160, %v1141
      %v1169 = vsel %vm539, %v1161, %v1143
      %v1170 = vsel %vm539, %v1162, %v1145
      %v1171 = vsel %vm539, %v1163, %v1147
      %v1172 = vsel %vm548, %v1164, %v972
      %v1173 = vsel %vm548, %v1165, %v973
      %v1174 = vsel %vm548, %v1166, %v974
      %v1175 = vsel %vm548, %v1167, %v975
      %v1176 = vsel %vm548, %v1168, %v976
      %v1177 = vsel %vm548, %v1169, %v977
      %v1178 = vsel %vm548, %v1170, %v978
      %v1179 = vsel %vm548, %v1171, %v979
      %s1180 = scalar_lea.vmem %s224, 8
      %1181 = vst.msk [vmem:[%s1180] sm:$0xff] %vm557, %v1172
      %1182 = vst.msk [vmem:[%s1180 + $0x10] sm:$0xff] %vm557, %v1173
      %1183 = vst.msk [vmem:[%s1180 + $0x20] sm:$0xff] %vm557, %v1174
      %1184 = vst.msk [vmem:[%s1180 + $0x30] sm:$0xff] %vm557, %v1175
      %1185 = vst.msk [vmem:[%s1180 + $0x40] sm:$0xff] %vm557, %v1176
      %1186 = vst.msk [vmem:[%s1180 + $0x50] sm:$0xff] %vm557, %v1177
      %1187 = vst.msk [vmem:[%s1180 + $0x60] sm:$0xff] %vm557, %v1178
      %1188 = vst.msk [vmem:[%s1180 + $0x70] sm:$0xff] %vm557, %v1179
      %p1189 = scmp.lt.s32.totalorder %s16, 1
      %s1190 = scalar_select %p1189, %s16, 1
      %s1191 = smul.addr %s1190, 16
      %s1192 = smul.addr %s1191, 8
      %s1193 = scalar_lea.vmem %s5, %s1192
      // Predicated region
      $region41: #{seg_v5_block_innermost.3} parent=39 // pred_check
        %p1194 = pneg %p144
      $region42: #{seg_v5_block_innermost.3} parent=39 // pred_check_branch
        %1196 = sbr.rel (%p1194) target = $region44
      $region43: #{seg_v5_block_innermost.3} parent=39 // pred_region
        _
      $region44: #{seg_v5_block_innermost.3} parent=39 // pred_fallthru
        _
    $region40: #{seg_v5_block_innermost.3} parent=5 // pred_fallthru
      _
    %p1197 = scmp.le.s32.totalorder 2, %s11
    // Predicated region
    $region45: #{seg_v5_block_innermost.3} parent=5 // pred_check
      %p1198 = pneg %p1197
    $region46: #{seg_v5_block_innermost.3} parent=5 // pred_check_branch
      %1200 = sbr.rel (%p1198) target = $region48
    $region47: #{seg_v5_block_innermost.3} parent=5 // pred_region
      %s1201 = ssub.s32 %s11, 2
      // Predicated region
      $region49: #{seg_v5_block_innermost.3} parent=47 // pred_check
        %p1202 = pneg %p150
      $region50: #{seg_v5_block_innermost.3} parent=47 // pred_check_branch
        %1204 = sbr.rel (%p1202) target = $region52
      $region51: #{seg_v5_block_innermost.3} parent=47 // pred_region
        %p1205 = scmp.lt.s32.totalorder %s17, 1
        %s1206 = scalar_select %p1205, %s17, 1
        %s1207 = smul.addr %s1206, 16
        %s1208 = smul.addr %s1207, 8
        %s1209 = scalar_lea.vmem %s5, %s1208
      $region52: #{seg_v5_block_innermost.3} parent=47 // pred_fallthru
        _
    $region48: #{seg_v5_block_innermost.3} parent=5 // pred_fallthru
      _
  $region6: #{seg_v5_block_innermost.3} parent=0 // loop_footer
    %s15 = sadd.s32 1, %s11
  $region7: #{seg_v5_block_innermost.3} parent=0 // loop_footer_branch
    %10 = sbr.rel target = $region3
  $region8: #{seg_v5_block_innermost.3} parent=0 // loop_exit
    _

</llo_original>
